<compile_context>
chip_gen: v7x
topology: tpu7x:2x2x1
jax: 0.10.0
libtpu: 0.0.40
codegen_flags: <defaults>
</compile_context>

<pallas_src>
import jax
import jax.numpy as jnp
from jax.experimental import pallas as pl
from jax.experimental.pallas import tpu as pltpu

NEG_SLOPE = 0.01  # nn.LeakyReLU default


def _leaky_relu(x):
    return jnp.where(x > 0, x, NEG_SLOPE * x)


def basic_block_kernel(x_ref, w1_ref, b1_ref, w2_ref, b2_ref, out_ref, lhs_ref):
    # x_ref  : (Nb, H, W*C)        lane-dense input block (f32), UNPADDED
    # w1_ref : (3*W*C, W*C)        concatenated banded conv1 weights (bf16)
    # b1_ref : (1, W*C)            conv1 bias tiled across W (f32)
    # w2_ref : (3*W*C, W*C)        concatenated banded conv2 weights (bf16)
    # b2_ref : (1, W*C)
    # out_ref: (Nb, H, W*C)
    # lhs_ref: (Nb, H, 3*W*C)      bf16 VMEM im2col scratch (reused by both convs)
    Nb, H, WC = out_ref.shape
    M = Nb * H
    bf16 = jnp.bfloat16

    x_f32 = x_ref[...]                       # (Nb, H, WC) f32 identity path
    xb = x_f32.astype(bf16)                  # cast to bf16 exactly once

    # Halo zeros of the shifted bands (the H zero-padding, done in-kernel).
    # These slots are never overwritten by the band fills below, so zeroing once
    # per grid step covers both convs (and is re-done every step -> safe if the
    # batch axis is split per-core on v7x).
    zero_rows = jnp.zeros((Nb, 1, WC), bf16)
    lhs_ref[:, 0:1, 0:WC] = zero_rows                      # ky=0 band, top row
    lhs_ref[:, H - 1:H, 2 * WC:3 * WC] = zero_rows         # ky=2 band, bottom row

    def fill_bands(v):
        # v: (Nb, H, WC) bf16.  Band ky holds xpad[row + ky] (xpad = H-padded v).
        lhs_ref[:, 1:H, 0:WC] = v[:, 0:H - 1, :]           # ky = 0
        lhs_ref[:, :, WC:2 * WC] = v                       # ky = 1
        lhs_ref[:, 0:H - 1, 2 * WC:3 * WC] = v[:, 1:H, :]  # ky = 2

    # ---- conv1 + bias + LeakyReLU: one deep K = 3*W*C matmul, f32 accumulation
    fill_bands(xb)
    acc1 = jnp.dot(lhs_ref[...].reshape(M, 3 * WC), w1_ref[...],
                   preferred_element_type=jnp.float32)
    act1 = _leaky_relu(acc1 + b1_ref[...])                 # (M, WC) f32

    # ---- conv2 + bias + residual + LeakyReLU
    fill_bands(act1.astype(bf16).reshape(Nb, H, WC))
    acc2 = jnp.dot(lhs_ref[...].reshape(M, 3 * WC), w2_ref[...],
                   preferred_element_type=jnp.float32)
    out = _leaky_relu(acc2 + b2_ref[...] + x_f32.reshape(M, WC))
    out_ref[...] = out.reshape(Nb, H, WC).astype(out_ref.dtype)


def _banded_weights(w_hwio, W):
    """Fold the kx taps + x-direction zero padding of a 3x3 'same' conv into a
    banded matrix per ky: B[ky] has shape (W*Cin, W*Cout) with
    B[ky][(j_out+kx-1)*Cin + ci, j_out*Cout + co] = w[ky, kx, ci, co]
    (terms with j_out+kx-1 outside [0, W) are dropped == zero padding)."""
    KH, KW, Cin, Cout = w_hwio.shape
    j = jnp.arange(W)
    # S[kx, j_in, j_out] = 1 iff j_in == j_out + kx - KW//2
    S = (j[None, :, None] ==
         (j[None, None, :] + jnp.arange(KW)[:, None, None] - (KW // 2)))
    S = S.astype(w_hwio.dtype)
    B = jnp.einsum('kab,hkio->haibo', S, w_hwio)        # (KH, W, Cin, W, Cout)
    return B.reshape(KH, W * Cin, W * Cout)


def prepare_block_params(w1_oihw, b1, w2_oihw, b2, W):
    """Weight-only preprocessing, done ONCE per model (not per forward call)."""
    Cout, Cin = w1_oihw.shape[0], w1_oihw.shape[1]
    assert Cin == Cout, "residual add requires inplanes == planes"
    w1_hwio = jnp.transpose(w1_oihw, (2, 3, 1, 0))              # HWIO
    w2_hwio = jnp.transpose(w2_oihw, (2, 3, 1, 0))
    B1 = _banded_weights(w1_hwio, W)                            # (3, W*Cin, W*Cout)
    B2 = _banded_weights(w2_hwio, W)
    # Concatenate the 3 ky bands along K -> a single (3*W*Cin, W*Cout) matrix.
    W1cat = B1.reshape(3 * W * Cin, W * Cout).astype(jnp.bfloat16)
    W2cat = B2.reshape(3 * W * Cout, W * Cout).astype(jnp.bfloat16)
    b1_lane = jnp.tile(b1, W).reshape(1, W * Cout).astype(jnp.float32)
    b2_lane = jnp.tile(b2, W).reshape(1, W * Cout).astype(jnp.float32)
    return W1cat, b1_lane, W2cat, b2_lane


def basic_block_forward(x_nchw, params, *, nb=64, core_parallel=False):
    """Residual block forward (stride=1, no downsample). x_nchw: (N, C, H, W)."""
    W1cat, b1_lane, W2cat, b2_lane = params
    N, Cin, H, W = x_nchw.shape
    WC = W * Cin
    assert WC % 128 == 0, "lane-dense layout requires W*C to be a multiple of 128"
    assert W1cat.shape == (3 * WC, WC)

    # NHWC -> lane-dense (N, H, W*C).  No jnp.pad here: H-padding is in-kernel.
    x_lane = jnp.transpose(x_nchw, (0, 2, 3, 1)).reshape(N, H, WC)

    nb = max(1, min(nb, N))
    n_blocks = pl.cdiv(N, nb)
    n_pad = n_blocks * nb
    if n_pad != N:
        x_lane = jnp.pad(x_lane, ((0, n_pad - N), (0, 0), (0, 0)))

    dims = (pltpu.CORE_PARALLEL,) if core_parallel else ("parallel",)

    out_lane = pl.pallas_call(
        basic_block_kernel,
        out_shape=jax.ShapeDtypeStruct((n_pad, H, WC), x_nchw.dtype),
        grid=(n_blocks,),
        in_specs=[
            pl.BlockSpec((nb, H, WC), lambda n: (n, 0, 0)),
            pl.BlockSpec((3 * WC, WC), lambda n: (0, 0)),
            pl.BlockSpec((1, WC), lambda n: (0, 0)),
            pl.BlockSpec((3 * WC, WC), lambda n: (0, 0)),
            pl.BlockSpec((1, WC), lambda n: (0, 0)),
        ],
        out_specs=pl.BlockSpec((nb, H, WC), lambda n: (n, 0, 0)),
        scratch_shapes=[pltpu.VMEM((nb, H, 3 * WC), jnp.bfloat16)],
        compiler_params=pltpu.CompilerParams(dimension_semantics=dims),
    )(x_lane, W1cat, b1_lane, W2cat, b2_lane)

    out_lane = out_lane[:N]
    out_nhwc = out_lane.reshape(N, H, W, Cin)
    return jnp.transpose(out_nhwc, (0, 3, 1, 2))                # back to NCHW


def _reference_forward(x, w1, b1, w2, b2):
    """Pure-JAX f32 reference mirroring the PyTorch conv block (NCHW / OIHW)."""
    dn = ("NCHW", "OIHW", "NCHW")
    out = jax.lax.conv_general_dilated(x, w1, (1, 1), ((1, 1), (1, 1)),
                                       dimension_numbers=dn)
    out = out + b1[None, :, None, None]
    out = _leaky_relu(out)
    out = jax.lax.conv_general_dilated(out, w2, (1, 1), ((1, 1), (1, 1)),
                                       dimension_numbers=dn)
    out = out + b2[None, :, None, None]
    out = out + x
    return _leaky_relu(out)


if __name__ == "__main__":
    # inplanes=planes=8, H=W=16 so that W*C = 128 (fully lane-dense).
    # N=32 with nb=16 -> grid=(2,), M = nb*H = 256 rows per MXU matmul.
    N, C, H, W = 32, 8, 16, 16
    NB = 16

    key = jax.random.PRNGKey(0)
    kx, kw1, kb1, kw2, kb2 = jax.random.split(key, 5)

    x = jax.random.normal(kx, (N, C, H, W), jnp.float32)
    w1 = jax.random.normal(kw1, (C, C, 3, 3), jnp.float32) * 0.1   # conv1.weight
    b1 = jax.random.normal(kb1, (C,), jnp.float32) * 0.1           # conv1.bias
    w2 = jax.random.normal(kw2, (C, C, 3, 3), jnp.float32) * 0.1   # conv2.weight
    b2 = jax.random.normal(kb2, (C,), jnp.float32) * 0.1           # conv2.bias

    # Weight-only prep runs once per model.
    params = jax.tree_util.tree_map(jax.block_until_ready,
                                    prepare_block_params(w1, b1, w2, b2, W))

    fwd = jax.jit(lambda xx: basic_block_forward(xx, params, nb=NB))
    out = jax.block_until_ready(fwd(x))

    ref = _reference_forward(x, w1, b1, w2, b2)
    assert out.shape == (N, C, H, W)
    # bf16 MXU operands (f32 accumulation) -> loosened tolerance vs f32 reference.
    assert jnp.allclose(out, ref, atol=5e-2, rtol=5e-2), "mismatch vs reference"

    print("KERNEL_OK")
</pallas_src>

<mosaic_0001>
module attributes {stable_mosaic.version = 11 : i64} {
  func.func @basic_block_kernel(%arg0: i32, %arg1: memref<16x16x128xf32, #tpu.memory_space<vmem>>, %arg2: memref<384x128xbf16, #tpu.memory_space<vmem>>, %arg3: memref<1x128xf32, #tpu.memory_space<vmem>>, %arg4: memref<384x128xbf16, #tpu.memory_space<vmem>>, %arg5: memref<1x128xf32, #tpu.memory_space<vmem>>, %arg6: memref<16x16x128xf32, #tpu.memory_space<vmem>>, %arg7: memref<16x16x384xbf16, #tpu.memory_space<vmem>>) attributes {dimension_semantics = [#tpu.dimension_semantics<parallel>], iteration_bounds = array<i64: 2>, scalar_prefetch = 0 : i64, scratch_operands = 1 : i64, tpu.core_type = #tpu.core_type<tc>, window_params = [{transform_indices = @transform_0, window_bounds = array<i64: 16, 16, 128>}, {pipeline_mode = #tpu.pipeline_mode<synchronous>, transform_indices = @transform_1, window_bounds = array<i64: 384, 128>}, {pipeline_mode = #tpu.pipeline_mode<synchronous>, transform_indices = @transform_2, window_bounds = array<i64: 1, 128>}, {pipeline_mode = #tpu.pipeline_mode<synchronous>, transform_indices = @transform_3, window_bounds = array<i64: 384, 128>}, {pipeline_mode = #tpu.pipeline_mode<synchronous>, transform_indices = @transform_4, window_bounds = array<i64: 1, 128>}, {transform_indices = @transform_5, window_bounds = array<i64: 16, 16, 128>}]} {
    %c0 = arith.constant 0 : index
    %c0_0 = arith.constant 0 : index
    %c0_1 = arith.constant 0 : index
    %0 = vector.load %arg1[%c0, %c0_0, %c0_1] : memref<16x16x128xf32, #tpu.memory_space<vmem>>, vector<16x16x128xf32>
    %1 = arith.truncf %0 : vector<16x16x128xf32> to vector<16x16x128xbf16>
    %cst = arith.constant 0.000000e+00 : bf16
    %2 = vector.broadcast %cst : bf16 to vector<16x1x128xbf16>
    %c0_2 = arith.constant 0 : index
    %c0_3 = arith.constant 0 : index
    %c0_4 = arith.constant 0 : index
    %3 = vector.load %arg7[%c0_2, %c0_3, %c0_4] : memref<16x16x384xbf16, #tpu.memory_space<vmem>>, vector<16x1x128xbf16>
    tpu.vector_store %arg7[%c0_2, %c0_3, %c0_4], %2 {strides = array<i32>} : memref<16x16x384xbf16, #tpu.memory_space<vmem>>, vector<16x1x128xbf16>,
    %c0_5 = arith.constant 0 : index
    %c15 = arith.constant 15 : index
    %c256 = arith.constant 256 : index
    %4 = vector.load %arg7[%c0_5, %c15, %c256] : memref<16x16x384xbf16, #tpu.memory_space<vmem>>, vector<16x1x128xbf16>
    tpu.vector_store %arg7[%c0_5, %c15, %c256], %2 {strides = array<i32>} : memref<16x16x384xbf16, #tpu.memory_space<vmem>>, vector<16x1x128xbf16>,
    %5 = vector.extract_strided_slice %1 {offsets = [0, 0, 0], sizes = [16, 15, 128], strides = [1, 1, 1]} : vector<16x16x128xbf16> to vector<16x15x128xbf16>
    %c0_6 = arith.constant 0 : index
    %c1 = arith.constant 1 : index
    %c0_7 = arith.constant 0 : index
    %6 = vector.load %arg7[%c0_6, %c1, %c0_7] : memref<16x16x384xbf16, #tpu.memory_space<vmem>>, vector<16x15x128xbf16>
    tpu.vector_store %arg7[%c0_6, %c1, %c0_7], %5 {strides = array<i32>} : memref<16x16x384xbf16, #tpu.memory_space<vmem>>, vector<16x15x128xbf16>,
    %c0_8 = arith.constant 0 : index
    %c0_9 = arith.constant 0 : index
    %c128 = arith.constant 128 : index
    %7 = vector.load %arg7[%c0_8, %c0_9, %c128] : memref<16x16x384xbf16, #tpu.memory_space<vmem>>, vector<16x16x128xbf16>
    tpu.vector_store %arg7[%c0_8, %c0_9, %c128], %1 {strides = array<i32>} : memref<16x16x384xbf16, #tpu.memory_space<vmem>>, vector<16x16x128xbf16>,
    %8 = vector.extract_strided_slice %1 {offsets = [0, 1, 0], sizes = [16, 15, 128], strides = [1, 1, 1]} : vector<16x16x128xbf16> to vector<16x15x128xbf16>
    %c0_10 = arith.constant 0 : index
    %c0_11 = arith.constant 0 : index
    %c256_12 = arith.constant 256 : index
    %9 = vector.load %arg7[%c0_10, %c0_11, %c256_12] : memref<16x16x384xbf16, #tpu.memory_space<vmem>>, vector<16x15x128xbf16>
    tpu.vector_store %arg7[%c0_10, %c0_11, %c256_12], %8 {strides = array<i32>} : memref<16x16x384xbf16, #tpu.memory_space<vmem>>, vector<16x15x128xbf16>,
    %c0_13 = arith.constant 0 : index
    %c0_14 = arith.constant 0 : index
    %c0_15 = arith.constant 0 : index
    %10 = vector.load %arg7[%c0_13, %c0_14, %c0_15] : memref<16x16x384xbf16, #tpu.memory_space<vmem>>, vector<16x16x384xbf16>
    %11 = vector.shape_cast %10 : vector<16x16x384xbf16> to vector<256x384xbf16>
    %c0_16 = arith.constant 0 : index
    %c0_17 = arith.constant 0 : index
    %12 = vector.load %arg2[%c0_16, %c0_17] : memref<384x128xbf16, #tpu.memory_space<vmem>>, vector<384x128xbf16>
    %cst_18 = arith.constant dense<0.000000e+00> : vector<256x128xf32>
    %13 = tpu.matmul %11, %12, %cst_18 {dimension_numbers = #tpu.dot_dimension_numbers<[1], [0], [0], [1], [0, 0, 1, 1], [], []>} : vector<256x384xbf16>, vector<384x128xbf16>, vector<256x128xf32> -> vector<256x128xf32>
    %c0_19 = arith.constant 0 : index
    %c0_20 = arith.constant 0 : index
    %14 = vector.load %arg3[%c0_19, %c0_20] : memref<1x128xf32, #tpu.memory_space<vmem>>, vector<1x128xf32>
    %15 = vector.broadcast %14 : vector<1x128xf32> to vector<256x128xf32>
    %16 = arith.addf %13, %15 : vector<256x128xf32>
    %cst_21 = arith.constant 0.000000e+00 : f32
    %17 = vector.broadcast %cst_21 : f32 to vector<256x128xf32>
    %18 = arith.cmpf ogt, %16, %17 : vector<256x128xf32>
    %cst_22 = arith.constant 0.00999999977 : f32
    %19 = vector.broadcast %cst_22 : f32 to vector<256x128xf32>
    %20 = arith.mulf %19, %16 : vector<256x128xf32>
    %21 = arith.select %18, %16, %20 : vector<256x128xi1>, vector<256x128xf32>
    %22 = arith.truncf %21 : vector<256x128xf32> to vector<256x128xbf16>
    %23 = vector.shape_cast %22 : vector<256x128xbf16> to vector<16x16x128xbf16>
    %24 = vector.extract_strided_slice %23 {offsets = [0, 0, 0], sizes = [16, 15, 128], strides = [1, 1, 1]} : vector<16x16x128xbf16> to vector<16x15x128xbf16>
    %c0_23 = arith.constant 0 : index
    %c1_24 = arith.constant 1 : index
    %c0_25 = arith.constant 0 : index
    %25 = vector.load %arg7[%c0_23, %c1_24, %c0_25] : memref<16x16x384xbf16, #tpu.memory_space<vmem>>, vector<16x15x128xbf16>
    tpu.vector_store %arg7[%c0_23, %c1_24, %c0_25], %24 {strides = array<i32>} : memref<16x16x384xbf16, #tpu.memory_space<vmem>>, vector<16x15x128xbf16>,
    %c0_26 = arith.constant 0 : index
    %c0_27 = arith.constant 0 : index
    %c128_28 = arith.constant 128 : index
    %26 = vector.load %arg7[%c0_26, %c0_27, %c128_28] : memref<16x16x384xbf16, #tpu.memory_space<vmem>>, vector<16x16x128xbf16>
    tpu.vector_store %arg7[%c0_26, %c0_27, %c128_28], %23 {strides = array<i32>} : memref<16x16x384xbf16, #tpu.memory_space<vmem>>, vector<16x16x128xbf16>,
    %27 = vector.extract_strided_slice %23 {offsets = [0, 1, 0], sizes = [16, 15, 128], strides = [1, 1, 1]} : vector<16x16x128xbf16> to vector<16x15x128xbf16>
    %c0_29 = arith.constant 0 : index
    %c0_30 = arith.constant 0 : index
    %c256_31 = arith.constant 256 : index
    %28 = vector.load %arg7[%c0_29, %c0_30, %c256_31] : memref<16x16x384xbf16, #tpu.memory_space<vmem>>, vector<16x15x128xbf16>
    tpu.vector_store %arg7[%c0_29, %c0_30, %c256_31], %27 {strides = array<i32>} : memref<16x16x384xbf16, #tpu.memory_space<vmem>>, vector<16x15x128xbf16>,
    %c0_32 = arith.constant 0 : index
    %c0_33 = arith.constant 0 : index
    %c0_34 = arith.constant 0 : index
    %29 = vector.load %arg7[%c0_32, %c0_33, %c0_34] : memref<16x16x384xbf16, #tpu.memory_space<vmem>>, vector<16x16x384xbf16>
    %30 = vector.shape_cast %29 : vector<16x16x384xbf16> to vector<256x384xbf16>
    %c0_35 = arith.constant 0 : index
    %c0_36 = arith.constant 0 : index
    %31 = vector.load %arg4[%c0_35, %c0_36] : memref<384x128xbf16, #tpu.memory_space<vmem>>, vector<384x128xbf16>
    %cst_37 = arith.constant dense<0.000000e+00> : vector<256x128xf32>
    %32 = tpu.matmul %30, %31, %cst_37 {dimension_numbers = #tpu.dot_dimension_numbers<[1], [0], [0], [1], [0, 0, 1, 1], [], []>} : vector<256x384xbf16>, vector<384x128xbf16>, vector<256x128xf32> -> vector<256x128xf32>
    %c0_38 = arith.constant 0 : index
    %c0_39 = arith.constant 0 : index
    %33 = vector.load %arg5[%c0_38, %c0_39] : memref<1x128xf32, #tpu.memory_space<vmem>>, vector<1x128xf32>
    %34 = vector.broadcast %33 : vector<1x128xf32> to vector<256x128xf32>
    %35 = arith.addf %32, %34 : vector<256x128xf32>
    %36 = vector.shape_cast %0 : vector<16x16x128xf32> to vector<256x128xf32>
    %37 = arith.addf %35, %36 : vector<256x128xf32>
    %cst_40 = arith.constant 0.000000e+00 : f32
    %38 = vector.broadcast %cst_40 : f32 to vector<256x128xf32>
    %39 = arith.cmpf ogt, %37, %38 : vector<256x128xf32>
    %cst_41 = arith.constant 0.00999999977 : f32
    %40 = vector.broadcast %cst_41 : f32 to vector<256x128xf32>
    %41 = arith.mulf %40, %37 : vector<256x128xf32>
    %42 = arith.select %39, %37, %41 : vector<256x128xi1>, vector<256x128xf32>
    %43 = vector.shape_cast %42 : vector<256x128xf32> to vector<16x16x128xf32>
    %c0_42 = arith.constant 0 : index
    %c0_43 = arith.constant 0 : index
    %c0_44 = arith.constant 0 : index
    %44 = vector.load %arg6[%c0_42, %c0_43, %c0_44] : memref<16x16x128xf32, #tpu.memory_space<vmem>>, vector<16x16x128xf32>
    tpu.vector_store %arg6[%c0_42, %c0_43, %c0_44], %43 {strides = array<i32>} : memref<16x16x128xf32, #tpu.memory_space<vmem>>, vector<16x16x128xf32>,
    return
  }
  func.func @transform_0(%arg0: i32) -> (i32, i32, i32) {
    %c0_i32 = arith.constant 0 : i32
    %c0_i32_0 = arith.constant 0 : i32
    %c0_i32_1 = arith.constant 0 : i32
    return %arg0, %c0_i32, %c0_i32_0 : i32, i32, i32
  }
  func.func @transform_1(%arg0: i32) -> (i32, i32) {
    %c0_i32 = arith.constant 0 : i32
    %c0_i32_0 = arith.constant 0 : i32
    %c0_i32_1 = arith.constant 0 : i32
    return %c0_i32, %c0_i32_0 : i32, i32
  }
  func.func @transform_2(%arg0: i32) -> (i32, i32) {
    %c0_i32 = arith.constant 0 : i32
    %c0_i32_0 = arith.constant 0 : i32
    %c0_i32_1 = arith.constant 0 : i32
    return %c0_i32, %c0_i32_0 : i32, i32
  }
  func.func @transform_3(%arg0: i32) -> (i32, i32) {
    %c0_i32 = arith.constant 0 : i32
    %c0_i32_0 = arith.constant 0 : i32
    %c0_i32_1 = arith.constant 0 : i32
    return %c0_i32, %c0_i32_0 : i32, i32
  }
  func.func @transform_4(%arg0: i32) -> (i32, i32) {
    %c0_i32 = arith.constant 0 : i32
    %c0_i32_0 = arith.constant 0 : i32
    %c0_i32_1 = arith.constant 0 : i32
    return %c0_i32, %c0_i32_0 : i32, i32
  }
  func.func @transform_5(%arg0: i32) -> (i32, i32, i32) {
    %c0_i32 = arith.constant 0 : i32
    %c0_i32_0 = arith.constant 0 : i32
    %c0_i32_1 = arith.constant 0 : i32
    return %arg0, %c0_i32, %c0_i32_0 : i32, i32, i32
  }
}

</mosaic_0001>

<llo_original>
// kernel: _lambda_.1
$region0: #{_lambda_.1}
  #allocation0 [shape = 'u32[]', space=smem, size = 0x4, offset = 0x4, fixed_abs, tag = 'smem constant byte address 0x4 - core index']
  #allocation1 [shape = 'u32[144,128]{1,0:T(1,128)}', space=vmem, size = 0x12000, scoped, tag = 'internal scratch']
  #allocation2 [shape = 'bf16[16,16,384]{2,1,0:T(16,128)(2,1)}', space=vmem, size = 0x30000, scoped, tag = 'scratch operand']
  %s0 = inlined_call_operand.vmem [shape: f32[32,16,128], index: 0, kind: input, shape index: {}]
  %s1 = inlined_call_operand.vmem [shape: bf16[384,128], index: 1, kind: input, shape index: {}]
  %s2 = inlined_call_operand.vmem [shape: f32[1,128], index: 2, kind: input, shape index: {}]
  %s3 = inlined_call_operand.vmem [shape: bf16[384,128], index: 3, kind: input, shape index: {}]
  %s4 = inlined_call_operand.vmem [shape: f32[1,128], index: 4, kind: input, shape index: {}]
  %s5 = inlined_call_operand.vmem [shape: f32[32,16,128], index: 5, kind: output, shape index: {}]
  %s6 = sld [smem:[#allocation0]]
  $region53: #{_lambda_.1} parent=0
    _
  %s8 = ssub.s32 1, %s6
  %s9 = scalar_select 0, %s8, %s6
  loop: start=0, step=1, limit=4
  $region2: #{_lambda_.1} parent=0 // loop_pre_header
    _
  $region3: #{_lambda_.1} parent=0 // loop_header
    %s11 = sphi 0, %s15
    %p12 = scmp.ge.s32.totalorder %s11, 4
    %s21 = sphi 0, %s23
    %s24 = sphi 0, %s21
    %s25 = sphi 0, %s24
    %s41 = sphi 0, %s25
    %s45 = sphi 0, %s45
    %s47 = sphi 0, %s45
    %s48 = sphi 0, %s47
    %s62 = sphi 0, %s48
    %s66 = sphi 0, %s66
    %s68 = sphi 0, %s66
    %s69 = sphi 0, %s68
    %s83 = sphi 0, %s69
    %s87 = sphi 0, %s87
    %s89 = sphi 0, %s87
    %s90 = sphi 0, %s89
    %s104 = sphi 0, %s90
    %s108 = sphi 0, %s108
    %s110 = sphi 0, %s108
    %s111 = sphi 0, %s110
    %s125 = sphi 0, %s111
    %s131 = sphi 0, %s133
    %s134 = sphi 0, %s131
    %s135 = sphi 0, %s134
    %s151 = sphi 0, %s135
  $region4: #{_lambda_.1} parent=0 // loop_header_branch
    %14 = sbr.rel (%p12) target = $region8
  $region5: #{_lambda_.1} parent=0 // loop_body
    %s16 = ssub.s32 %s11, 1
    %s17 = ssub.s32 %s11, 2
    %s18 = sadd.s32 %s11, 1
    %s19 = ssub.s32 %s11, %s18
    %p20 = scmp.eq.s32.totalorder %s19, 0
    %s22 = sadd.s32 %s21, 1
    %s23 = scalar_select %p20, %s21, %s22
    %p26 = pneg %p20
    %p27 = scmp.eq.s32.totalorder %s11, 1
    %p28 = por %p26, %p27
    %p29 = scmp.ne.s32.totalorder %s21, %s24
    %p30 = scmp.eq.s32.totalorder %s11, 0
    %p31 = por %p29, %p30
    %p32 = scmp.ne.s32.totalorder %s21, %s24
    %p33 = scmp.eq.s32.totalorder %s16, 1
    %p34 = por %p32, %p33
    %p35 = scmp.ne.s32.totalorder %s24, %s25
    %p36 = scmp.eq.s32.totalorder %s16, 0
    %p37 = por %p35, %p36
    %p38 = scmp.ne.s32.totalorder %s24, %s25
    %p39 = scmp.eq.s32.totalorder %s17, 1
    %p40 = por %p38, %p39
    %p42 = scmp.ne.s32.totalorder %s25, %s41
    %p43 = scmp.eq.s32.totalorder %s17, 0
    %p44 = por %p42, %p43
    %s46 = sadd.s32 %s45, 1
    %p49 = scmp.eq.s32.totalorder %s11, 1
    %p50 = scmp.ne.s32.totalorder %s45, %s47
    %p51 = scmp.eq.s32.totalorder %s11, 0
    %p52 = por %p50, %p51
    %p53 = scmp.ne.s32.totalorder %s45, %s47
    %p54 = scmp.eq.s32.totalorder %s16, 1
    %p55 = por %p53, %p54
    %p56 = scmp.ne.s32.totalorder %s47, %s48
    %p57 = scmp.eq.s32.totalorder %s16, 0
    %p58 = por %p56, %p57
    %p59 = scmp.ne.s32.totalorder %s47, %s48
    %p60 = scmp.eq.s32.totalorder %s17, 1
    %p61 = por %p59, %p60
    %p63 = scmp.ne.s32.totalorder %s48, %s62
    %p64 = scmp.eq.s32.totalorder %s17, 0
    %p65 = por %p63, %p64
    %s67 = sadd.s32 %s66, 1
    %p70 = scmp.eq.s32.totalorder %s11, 1
    %p71 = scmp.ne.s32.totalorder %s66, %s68
    %p72 = scmp.eq.s32.totalorder %s11, 0
    %p73 = por %p71, %p72
    %p74 = scmp.ne.s32.totalorder %s66, %s68
    %p75 = scmp.eq.s32.totalorder %s16, 1
    %p76 = por %p74, %p75
    %p77 = scmp.ne.s32.totalorder %s68, %s69
    %p78 = scmp.eq.s32.totalorder %s16, 0
    %p79 = por %p77, %p78
    %p80 = scmp.ne.s32.totalorder %s68, %s69
    %p81 = scmp.eq.s32.totalorder %s17, 1
    %p82 = por %p80, %p81
    %p84 = scmp.ne.s32.totalorder %s69, %s83
    %p85 = scmp.eq.s32.totalorder %s17, 0
    %p86 = por %p84, %p85
    %s88 = sadd.s32 %s87, 1
    %p91 = scmp.eq.s32.totalorder %s11, 1
    %p92 = scmp.ne.s32.totalorder %s87, %s89
    %p93 = scmp.eq.s32.totalorder %s11, 0
    %p94 = por %p92, %p93
    %p95 = scmp.ne.s32.totalorder %s87, %s89
    %p96 = scmp.eq.s32.totalorder %s16, 1
    %p97 = por %p95, %p96
    %p98 = scmp.ne.s32.totalorder %s89, %s90
    %p99 = scmp.eq.s32.totalorder %s16, 0
    %p100 = por %p98, %p99
    %p101 = scmp.ne.s32.totalorder %s89, %s90
    %p102 = scmp.eq.s32.totalorder %s17, 1
    %p103 = por %p101, %p102
    %p105 = scmp.ne.s32.totalorder %s90, %s104
    %p106 = scmp.eq.s32.totalorder %s17, 0
    %p107 = por %p105, %p106
    %s109 = sadd.s32 %s108, 1
    %p112 = scmp.eq.s32.totalorder %s11, 1
    %p113 = scmp.ne.s32.totalorder %s108, %s110
    %p114 = scmp.eq.s32.totalorder %s11, 0
    %p115 = por %p113, %p114
    %p116 = scmp.ne.s32.totalorder %s108, %s110
    %p117 = scmp.eq.s32.totalorder %s16, 1
    %p118 = por %p116, %p117
    %p119 = scmp.ne.s32.totalorder %s110, %s111
    %p120 = scmp.eq.s32.totalorder %s16, 0
    %p121 = por %p119, %p120
    %p122 = scmp.ne.s32.totalorder %s110, %s111
    %p123 = scmp.eq.s32.totalorder %s17, 1
    %p124 = por %p122, %p123
    %p126 = scmp.ne.s32.totalorder %s111, %s125
    %p127 = scmp.eq.s32.totalorder %s17, 0
    %p128 = por %p126, %p127
    %s129 = ssub.s32 %s11, %s18
    %p130 = scmp.eq.s32.totalorder %s129, 0
    %s132 = sadd.s32 %s131, 1
    %s133 = scalar_select %p130, %s131, %s132
    %p136 = pneg %p130
    %p137 = scmp.eq.s32.totalorder %s11, 1
    %p138 = por %p136, %p137
    %p139 = scmp.ne.s32.totalorder %s131, %s134
    %p140 = scmp.eq.s32.totalorder %s11, 0
    %p141 = por %p139, %p140
    %p142 = scmp.ne.s32.totalorder %s131, %s134
    %p143 = scmp.eq.s32.totalorder %s16, 1
    %p144 = por %p142, %p143
    %p145 = scmp.ne.s32.totalorder %s134, %s135
    %p146 = scmp.eq.s32.totalorder %s16, 0
    %p147 = por %p145, %p146
    %p148 = scmp.ne.s32.totalorder %s134, %s135
    %p149 = scmp.eq.s32.totalorder %s17, 1
    %p150 = por %p148, %p149
    %p152 = scmp.ne.s32.totalorder %s135, %s151
    %p153 = scmp.eq.s32.totalorder %s17, 0
    %p154 = por %p152, %p153
    %p155 = scmp.le.s32.totalorder 1, %s11
    %p156 = scmp.lt.s32.totalorder %s11, 3
    %p157 = pnand %p155, %p156
    %p158 = pneg %p157
    // Predicated region
    $region9: #{_lambda_.1} parent=5 // pred_check
      _
    $region10: #{_lambda_.1} parent=5 // pred_check_branch
      %160 = sbr.rel (%p157) target = $region12
    $region11: #{_lambda_.1} parent=5 // pred_region
      %s161 = ssub.s32 %s11, 1
      // Predicated region
      $region13: #{_lambda_.1} parent=11 // pred_check
        %p162 = pneg %p58
      $region14: #{_lambda_.1} parent=11 // pred_check_branch
        %164 = sbr.rel (%p162) target = $region16
      $region15: #{_lambda_.1} parent=11 // pred_region
        _
      $region16: #{_lambda_.1} parent=11 // pred_fallthru
        _
      // Predicated region
      $region17: #{_lambda_.1} parent=11 // pred_check
        %p165 = pneg %p79
      $region18: #{_lambda_.1} parent=11 // pred_check_branch
        %167 = sbr.rel (%p165) target = $region20
      $region19: #{_lambda_.1} parent=11 // pred_region
        _
      $region20: #{_lambda_.1} parent=11 // pred_fallthru
        _
      // Predicated region
      $region21: #{_lambda_.1} parent=11 // pred_check
        %p168 = pneg %p100
      $region22: #{_lambda_.1} parent=11 // pred_check_branch
        %170 = sbr.rel (%p168) target = $region24
      $region23: #{_lambda_.1} parent=11 // pred_region
        _
      $region24: #{_lambda_.1} parent=11 // pred_fallthru
        _
      // Predicated region
      $region25: #{_lambda_.1} parent=11 // pred_check
        %p171 = pneg %p121
      $region26: #{_lambda_.1} parent=11 // pred_check_branch
        %173 = sbr.rel (%p171) target = $region28
      $region27: #{_lambda_.1} parent=11 // pred_region
        _
      $region28: #{_lambda_.1} parent=11 // pred_fallthru
        _
    $region12: #{_lambda_.1} parent=5 // pred_fallthru
      _
    %p174 = scmp.lt.s32.totalorder %s11, 2
    // Predicated region
    $region29: #{_lambda_.1} parent=5 // pred_check
      %p175 = pneg %p174
    $region30: #{_lambda_.1} parent=5 // pred_check_branch
      %177 = sbr.rel (%p175) target = $region32
    $region31: #{_lambda_.1} parent=5 // pred_region
      // Predicated region
      $region33: #{_lambda_.1} parent=31 // pred_check
        %p178 = pneg %p31
      $region34: #{_lambda_.1} parent=31 // pred_check_branch
        %180 = sbr.rel (%p178) target = $region36
      $region35: #{_lambda_.1} parent=31 // pred_region
        %s181 = smul.u32 16, %s11
        %p182 = scmp.lt.s32.totalorder %s181, 31
        %s183 = scalar_select %p182, %s181, 31
        %s184 = smul.addr %s183, 2
        %s185 = smul.addr %s184, 8
        %s186 = scalar_lea.vmem %s0, %s185
        %s187 = smul.u32 16, %s11
      $region36: #{_lambda_.1} parent=31 // pred_fallthru
        _
    $region32: #{_lambda_.1} parent=5 // pred_fallthru
      _
    %p188 = scmp.le.s32.totalorder 1, %s11
    %p189 = scmp.lt.s32.totalorder %s11, 3
    %p190 = pnand %p188, %p189
    %p191 = pneg %p190
    // Predicated region
    $region37: #{_lambda_.1} parent=5 // pred_check
      _
    $region38: #{_lambda_.1} parent=5 // pred_check_branch
      %193 = sbr.rel (%p190) target = $region40
    $region39: #{_lambda_.1} parent=5 // pred_region
      %s194 = ssub.s32 %s11, 1
      %s195 = smul.u32 16, %s16
      %p196 = scmp.lt.s32.totalorder %s195, 31
      %s197 = scalar_select %p196, %s195, 31
      %s198 = smul.addr %s197, 2
      %s199 = smul.addr %s198, 8
      %s200 = scalar_lea.vmem %s0, %s199
      %p201 = pneg %p37
      %p202 = pneg %p34
      %p203 = pneg %p58
      %p204 = pneg %p55
      %p205 = pneg %p79
      %p206 = pneg %p76
      %p207 = pneg %p100
      %p208 = pneg %p97
      %p209 = pneg %p121
      %p210 = pneg %p118
      %p211 = pneg %p147
      %p212 = pneg %p144
      %s213 = smul.u32 16, %s16
      %p214 = scmp.lt.s32.totalorder %s213, 31
      %s215 = scalar_select %p214, %s213, 31
      %s216 = smul.addr %s215, 2
      %s217 = smul.addr %s216, 8
      %s218 = scalar_lea.vmem %s5, %s217
      %s219 = smul.u32 16, %s16
      %p220 = scmp.lt.s32.totalorder %s219, 31
      %s221 = scalar_select %p220, %s219, 31
      %s222 = smul.addr %s221, 2
      %s223 = smul.addr %s222, 8
      %s224 = scalar_lea.vmem %s0, %s223
      %s225 = smul.u32 16, %s16
      %s226 = smul.u32 16, %s16
      %p227 = scmp.lt.s32.totalorder %s226, 31
      %s228 = scalar_select %p227, %s226, 31
      %s229 = smul.addr %s228, 2
      %s230 = smul.addr %s229, 8
      %s231 = scalar_lea.vmem %s5, %s230
      %s232 = smul.u32 16, %s16
      %v234 = vld [vmem:[%s224] sm:$0xff]
      %v235 = vld [vmem:[%s224 + $0x8] sm:$0xff]
      %v236 = vld [vmem:[%s224 + $0x10] sm:$0xff]
      %v237 = vld [vmem:[%s224 + $0x18] sm:$0xff]
      %v238 = vld [vmem:[%s224 + $0x20] sm:$0xff]
      %v239 = vld [vmem:[%s224 + $0x28] sm:$0xff]
      %v240 = vld [vmem:[%s224 + $0x30] sm:$0xff]
      %v241 = vld [vmem:[%s224 + $0x38] sm:$0xff]
      %v242 = vld [vmem:[%s224 + $0x40] sm:$0xff]
      %v243 = vld [vmem:[%s224 + $0x48] sm:$0xff]
      %v244 = vld [vmem:[%s224 + $0x50] sm:$0xff]
      %v245 = vld [vmem:[%s224 + $0x58] sm:$0xff]
      %v246 = vld [vmem:[%s224 + $0x60] sm:$0xff]
      %v247 = vld [vmem:[%s224 + $0x68] sm:$0xff]
      %v248 = vld [vmem:[%s224 + $0x70] sm:$0xff]
      %v249 = vld [vmem:[%s224 + $0x78] sm:$0xff]
      %v250 = vld [vmem:[%s224 + $0x80] sm:$0xff]
      %v251 = vld [vmem:[%s224 + $0x88] sm:$0xff]
      %v252 = vld [vmem:[%s224 + $0x90] sm:$0xff]
      %v253 = vld [vmem:[%s224 + $0x98] sm:$0xff]
      %v254 = vld [vmem:[%s224 + $0xa0] sm:$0xff]
      %v255 = vld [vmem:[%s224 + $0xa8] sm:$0xff]
      %v256 = vld [vmem:[%s224 + $0xb0] sm:$0xff]
      %v257 = vld [vmem:[%s224 + $0xb8] sm:$0xff]
      %v258 = vld [vmem:[%s224 + $0xc0] sm:$0xff]
      %v259 = vld [vmem:[%s224 + $0xc8] sm:$0xff]
      %v260 = vld [vmem:[%s224 + $0xd0] sm:$0xff]
      %v261 = vld [vmem:[%s224 + $0xd8] sm:$0xff]
      %v262 = vld [vmem:[%s224 + $0xe0] sm:$0xff]
      %v263 = vld [vmem:[%s224 + $0xe8] sm:$0xff]
      %v264 = vld [vmem:[%s224 + $0xf0] sm:$0xff]
      %v265 = vld [vmem:[%s224 + $0xf8] sm:$0xff]
      %v266 = vpack.c.bf16 %v235, %v234
      %v267 = vpack.c.bf16 %v237, %v236
      %v268 = vpack.c.bf16 %v239, %v238
      %v269 = vpack.c.bf16 %v241, %v240
      %v270 = vpack.c.bf16 %v243, %v242
      %v271 = vpack.c.bf16 %v245, %v244
      %v272 = vpack.c.bf16 %v247, %v246
      %v273 = vpack.c.bf16 %v249, %v248
      %v274 = vpack.c.bf16 %v251, %v250
      %v275 = vpack.c.bf16 %v253, %v252
      %v276 = vpack.c.bf16 %v255, %v254
      %v277 = vpack.c.bf16 %v257, %v256
      %v278 = vpack.c.bf16 %v259, %v258
      %v279 = vpack.c.bf16 %v261, %v260
      %v280 = vpack.c.bf16 %v263, %v262
      %v281 = vpack.c.bf16 %v265, %v264
      %vm282 = vcmask 1040384
      %vm283 = vsmask.f32 256
      %vm284 = vmand %vm282, %vm283
      %v285 = vld [vmem:[#allocation2] sm:$0x1]
      %v286 = vsel %vm284, 0, %v285
      %287 = vst [vmem:[#allocation2] sm:$0x1] %v286
      %v288 = vld [vmem:[#allocation2 + $0x18] sm:$0x1]
      %v289 = vsel %vm284, 0, %v288
      %290 = vst [vmem:[#allocation2 + $0x18] sm:$0x1] %v289
      %v291 = vld [vmem:[#allocation2 + $0x30] sm:$0x1]
      %v292 = vsel %vm284, 0, %v291
      %293 = vst [vmem:[#allocation2 + $0x30] sm:$0x1] %v292
      %v294 = vld [vmem:[#allocation2 + $0x48] sm:$0x1]
      %v295 = vsel %vm284, 0, %v294
      %296 = vst [vmem:[#allocation2 + $0x48] sm:$0x1] %v295
      %v297 = vld [vmem:[#allocation2 + $0x60] sm:$0x1]
      %v298 = vsel %vm284, 0, %v297
      %299 = vst [vmem:[#allocation2 + $0x60] sm:$0x1] %v298
      %v300 = vld [vmem:[#allocation2 + $0x78] sm:$0x1]
      %v301 = vsel %vm284, 0, %v300
      %302 = vst [vmem:[#allocation2 + $0x78] sm:$0x1] %v301
      %v303 = vld [vmem:[#allocation2 + $0x90] sm:$0x1]
      %v304 = vsel %vm284, 0, %v303
      %305 = vst [vmem:[#allocation2 + $0x90] sm:$0x1] %v304
      %v306 = vld [vmem:[#allocation2 + $0xa8] sm:$0x1]
      %v307 = vsel %vm284, 0, %v306
      %308 = vst [vmem:[#allocation2 + $0xa8] sm:$0x1] %v307
      %v309 = vld [vmem:[#allocation2 + $0xc0] sm:$0x1]
      %v310 = vsel %vm284, 0, %v309
      %311 = vst [vmem:[#allocation2 + $0xc0] sm:$0x1] %v310
      %v312 = vld [vmem:[#allocation2 + $0xd8] sm:$0x1]
      %v313 = vsel %vm284, 0, %v312
      %314 = vst [vmem:[#allocation2 + $0xd8] sm:$0x1] %v313
      %v315 = vld [vmem:[#allocation2 + $0xf0] sm:$0x1]
      %v316 = vsel %vm284, 0, %v315
      %317 = vst [vmem:[#allocation2 + $0xf0] sm:$0x1] %v316
      %v318 = vld [vmem:[#allocation2 + $0x108] sm:$0x1]
      %v319 = vsel %vm284, 0, %v318
      %320 = vst [vmem:[#allocation2 + $0x108] sm:$0x1] %v319
      %v321 = vld [vmem:[#allocation2 + $0x120] sm:$0x1]
      %v322 = vsel %vm284, 0, %v321
      %323 = vst [vmem:[#allocation2 + $0x120] sm:$0x1] %v322
      %v324 = vld [vmem:[#allocation2 + $0x138] sm:$0x1]
      %v325 = vsel %vm284, 0, %v324
      %326 = vst [vmem:[#allocation2 + $0x138] sm:$0x1] %v325
      %v327 = vld [vmem:[#allocation2 + $0x150] sm:$0x1]
      %v328 = vsel %vm284, 0, %v327
      %329 = vst [vmem:[#allocation2 + $0x150] sm:$0x1] %v328
      %v330 = vld [vmem:[#allocation2 + $0x168] sm:$0x1]
      %v331 = vsel %vm284, 0, %v330
      %332 = vst [vmem:[#allocation2 + $0x168] sm:$0x1] %v331
      %vm333 = vcmask 1047559
      %vm334 = vsmask.f32 7966
      %vm335 = vmand %vm333, %vm334
      %v336 = vld [vmem:[#allocation2 + $0x10] sm:$0x80]
      %v337 = vsel %vm335, 0, %v336
      %338 = vst [vmem:[#allocation2 + $0x10] sm:$0x80] %v337
      %v339 = vld [vmem:[#allocation2 + $0x28] sm:$0x80]
      %v340 = vsel %vm335, 0, %v339
      %341 = vst [vmem:[#allocation2 + $0x28] sm:$0x80] %v340
      %v342 = vld [vmem:[#allocation2 + $0x40] sm:$0x80]
      %v343 = vsel %vm335, 0, %v342
      %344 = vst [vmem:[#allocation2 + $0x40] sm:$0x80] %v343
      %v345 = vld [vmem:[#allocation2 + $0x58] sm:$0x80]
      %v346 = vsel %vm335, 0, %v345
      %347 = vst [vmem:[#allocation2 + $0x58] sm:$0x80] %v346
      %v348 = vld [vmem:[#allocation2 + $0x70] sm:$0x80]
      %v349 = vsel %vm335, 0, %v348
      %350 = vst [vmem:[#allocation2 + $0x70] sm:$0x80] %v349
      %v351 = vld [vmem:[#allocation2 + $0x88] sm:$0x80]
      %v352 = vsel %vm335, 0, %v351
      %353 = vst [vmem:[#allocation2 + $0x88] sm:$0x80] %v352
      %v354 = vld [vmem:[#allocation2 + $0xa0] sm:$0x80]
      %v355 = vsel %vm335, 0, %v354
      %356 = vst [vmem:[#allocation2 + $0xa0] sm:$0x80] %v355
      %v357 = vld [vmem:[#allocation2 + $0xb8] sm:$0x80]
      %v358 = vsel %vm335, 0, %v357
      %359 = vst [vmem:[#allocation2 + $0xb8] sm:$0x80] %v358
      %v360 = vld [vmem:[#allocation2 + $0xd0] sm:$0x80]
      %v361 = vsel %vm335, 0, %v360
      %362 = vst [vmem:[#allocation2 + $0xd0] sm:$0x80] %v361
      %v363 = vld [vmem:[#allocation2 + $0xe8] sm:$0x80]
      %v364 = vsel %vm335, 0, %v363
      %365 = vst [vmem:[#allocation2 + $0xe8] sm:$0x80] %v364
      %v366 = vld [vmem:[#allocation2 + $0x100] sm:$0x80]
      %v367 = vsel %vm335, 0, %v366
      %368 = vst [vmem:[#allocation2 + $0x100] sm:$0x80] %v367
      %v369 = vld [vmem:[#allocation2 + $0x118] sm:$0x80]
      %v370 = vsel %vm335, 0, %v369
      %371 = vst [vmem:[#allocation2 + $0x118] sm:$0x80] %v370
      %v372 = vld [vmem:[#allocation2 + $0x130] sm:$0x80]
      %v373 = vsel %vm335, 0, %v372
      %374 = vst [vmem:[#allocation2 + $0x130] sm:$0x80] %v373
      %v375 = vld [vmem:[#allocation2 + $0x148] sm:$0x80]
      %v376 = vsel %vm335, 0, %v375
      %377 = vst [vmem:[#allocation2 + $0x148] sm:$0x80] %v376
      %v378 = vld [vmem:[#allocation2 + $0x160] sm:$0x80]
      %v379 = vsel %vm335, 0, %v378
      %380 = vst [vmem:[#allocation2 + $0x160] sm:$0x80] %v379
      %v381 = vld [vmem:[#allocation2 + $0x178] sm:$0x80]
      %v382 = vsel %vm335, 0, %v381
      %383 = vst [vmem:[#allocation2 + $0x178] sm:$0x80] %v382
      %v385 = vshrl.u32 %v266, 16
      %v387 = vrot.slane %v385, 7
      %v388 = vshll.u32 %v266, 16
      %v390 = vor.u32 %v387, %v388
      %v392 = vshrl.u32 %v267, 16
      %v394 = vrot.slane %v392, 7
      %v395 = vshll.u32 %v267, 16
      %v397 = vor.u32 %v394, %v395
      %v399 = vshrl.u32 %v268, 16
      %v401 = vrot.slane %v399, 7
      %v402 = vshll.u32 %v268, 16
      %v404 = vor.u32 %v401, %v402
      %v406 = vshrl.u32 %v269, 16
      %v408 = vrot.slane %v406, 7
      %v409 = vshll.u32 %v269, 16
      %v411 = vor.u32 %v408, %v409
      %v413 = vshrl.u32 %v270, 16
      %v415 = vrot.slane %v413, 7
      %v416 = vshll.u32 %v270, 16
      %v418 = vor.u32 %v415, %v416
      %v420 = vshrl.u32 %v271, 16
      %v422 = vrot.slane %v420, 7
      %v423 = vshll.u32 %v271, 16
      %v425 = vor.u32 %v422, %v423
      %v427 = vshrl.u32 %v272, 16
      %v429 = vrot.slane %v427, 7
      %v430 = vshll.u32 %v272, 16
      %v432 = vor.u32 %v429, %v430
      %v434 = vshrl.u32 %v273, 16
      %v436 = vrot.slane %v434, 7
      %v437 = vshll.u32 %v273, 16
      %v439 = vor.u32 %v436, %v437
      %v441 = vshrl.u32 %v274, 16
      %v443 = vrot.slane %v441, 7
      %v444 = vshll.u32 %v274, 16
      %v446 = vor.u32 %v443, %v444
      %v448 = vshrl.u32 %v275, 16
      %v450 = vrot.slane %v448, 7
      %v451 = vshll.u32 %v275, 16
      %v453 = vor.u32 %v450, %v451
      %v455 = vshrl.u32 %v276, 16
      %v457 = vrot.slane %v455, 7
      %v458 = vshll.u32 %v276, 16
      %v460 = vor.u32 %v457, %v458
      %v462 = vshrl.u32 %v277, 16
      %v464 = vrot.slane %v462, 7
      %v465 = vshll.u32 %v277, 16
      %v467 = vor.u32 %v464, %v465
      %v469 = vshrl.u32 %v278, 16
      %v471 = vrot.slane %v469, 7
      %v472 = vshll.u32 %v278, 16
      %v474 = vor.u32 %v471, %v472
      %v476 = vshrl.u32 %v279, 16
      %v478 = vrot.slane %v476, 7
      %v479 = vshll.u32 %v279, 16
      %v481 = vor.u32 %v478, %v479
      %v483 = vshrl.u32 %v280, 16
      %v485 = vrot.slane %v483, 7
      %v486 = vshll.u32 %v280, 16
      %v488 = vor.u32 %v485, %v486
      %v490 = vshrl.u32 %v281, 16
      %v492 = vrot.slane %v490, 7
      %v493 = vshll.u32 %v281, 16
      %v495 = vor.u32 %v492, %v493
      %vm512 = vcmask 1047552
      %vm513 = vsmask.f32 7938
      %vm514 = vmand %vm512, %vm513
      %v515 = vld [vmem:[#allocation2] sm:$0xff]
      %v516 = vsel %vm514, %v390, %v515
      %517 = vst [vmem:[#allocation2] sm:$0xff] %v516
      %v518 = vld [vmem:[#allocation2 + $0x18] sm:$0xff]
      %v519 = vsel %vm514, %v397, %v518
      %520 = vst [vmem:[#allocation2 + $0x18] sm:$0xff] %v519
      %v521 = vld [vmem:[#allocation2 + $0x30] sm:$0xff]
      %v522 = vsel %vm514, %v404, %v521
      %523 = vst [vmem:[#allocation2 + $0x30] sm:$0xff] %v522
      %v524 = vld [vmem:[#allocation2 + $0x48] sm:$0xff]
      %v525 = vsel %vm514, %v411, %v524
      %526 = vst [vmem:[#allocation2 + $0x48] sm:$0xff] %v525
      %v527 = vld [vmem:[#allocation2 + $0x60] sm:$0xff]
      %v528 = vsel %vm514, %v418, %v527
      %529 = vst [vmem:[#allocation2 + $0x60] sm:$0xff] %v528
      %v530 = vld [vmem:[#allocation2 + $0x78] sm:$0xff]
      %v531 = vsel %vm514, %v425, %v530
      %532 = vst [vmem:[#allocation2 + $0x78] sm:$0xff] %v531
      %v533 = vld [vmem:[#allocation2 + $0x90] sm:$0xff]
      %v534 = vsel %vm514, %v432, %v533
      %535 = vst [vmem:[#allocation2 + $0x90] sm:$0xff] %v534
      %v536 = vld [vmem:[#allocation2 + $0xa8] sm:$0xff]
      %v537 = vsel %vm514, %v439, %v536
      %538 = vst [vmem:[#allocation2 + $0xa8] sm:$0xff] %v537
      %v539 = vld [vmem:[#allocation2 + $0xc0] sm:$0xff]
      %v540 = vsel %vm514, %v446, %v539
      %541 = vst [vmem:[#allocation2 + $0xc0] sm:$0xff] %v540
      %v542 = vld [vmem:[#allocation2 + $0xd8] sm:$0xff]
      %v543 = vsel %vm514, %v453, %v542
      %544 = vst [vmem:[#allocation2 + $0xd8] sm:$0xff] %v543
      %v545 = vld [vmem:[#allocation2 + $0xf0] sm:$0xff]
      %v546 = vsel %vm514, %v460, %v545
      %547 = vst [vmem:[#allocation2 + $0xf0] sm:$0xff] %v546
      %v548 = vld [vmem:[#allocation2 + $0x108] sm:$0xff]
      %v549 = vsel %vm514, %v467, %v548
      %550 = vst [vmem:[#allocation2 + $0x108] sm:$0xff] %v549
      %v551 = vld [vmem:[#allocation2 + $0x120] sm:$0xff]
      %v552 = vsel %vm514, %v474, %v551
      %553 = vst [vmem:[#allocation2 + $0x120] sm:$0xff] %v552
      %v554 = vld [vmem:[#allocation2 + $0x138] sm:$0xff]
      %v555 = vsel %vm514, %v481, %v554
      %556 = vst [vmem:[#allocation2 + $0x138] sm:$0xff] %v555
      %v557 = vld [vmem:[#allocation2 + $0x150] sm:$0xff]
      %v558 = vsel %vm514, %v488, %v557
      %559 = vst [vmem:[#allocation2 + $0x150] sm:$0xff] %v558
      %v560 = vld [vmem:[#allocation2 + $0x168] sm:$0xff]
      %v561 = vsel %vm514, %v495, %v560
      %562 = vst [vmem:[#allocation2 + $0x168] sm:$0xff] %v561
      %563 = vst [vmem:[#allocation2 + $0x8] sm:$0xff] %v266
      %564 = vst [vmem:[#allocation2 + $0x20] sm:$0xff] %v267
      %565 = vst [vmem:[#allocation2 + $0x38] sm:$0xff] %v268
      %566 = vst [vmem:[#allocation2 + $0x50] sm:$0xff] %v269
      %567 = vst [vmem:[#allocation2 + $0x68] sm:$0xff] %v270
      %568 = vst [vmem:[#allocation2 + $0x80] sm:$0xff] %v271
      %569 = vst [vmem:[#allocation2 + $0x98] sm:$0xff] %v272
      %570 = vst [vmem:[#allocation2 + $0xb0] sm:$0xff] %v273
      %571 = vst [vmem:[#allocation2 + $0xc8] sm:$0xff] %v274
      %572 = vst [vmem:[#allocation2 + $0xe0] sm:$0xff] %v275
      %573 = vst [vmem:[#allocation2 + $0xf8] sm:$0xff] %v276
      %574 = vst [vmem:[#allocation2 + $0x110] sm:$0xff] %v277
      %575 = vst [vmem:[#allocation2 + $0x128] sm:$0xff] %v278
      %576 = vst [vmem:[#allocation2 + $0x140] sm:$0xff] %v279
      %577 = vst [vmem:[#allocation2 + $0x158] sm:$0xff] %v280
      %578 = vst [vmem:[#allocation2 + $0x170] sm:$0xff] %v281
      %v579 = vrot.slane %v388, 1
      %v580 = vor.u32 %v385, %v579
      %v581 = vrot.slane %v395, 1
      %v582 = vor.u32 %v392, %v581
      %v583 = vrot.slane %v402, 1
      %v584 = vor.u32 %v399, %v583
      %v585 = vrot.slane %v409, 1
      %v586 = vor.u32 %v406, %v585
      %v587 = vrot.slane %v416, 1
      %v588 = vor.u32 %v413, %v587
      %v589 = vrot.slane %v423, 1
      %v590 = vor.u32 %v420, %v589
      %v591 = vrot.slane %v430, 1
      %v592 = vor.u32 %v427, %v591
      %v593 = vrot.slane %v437, 1
      %v594 = vor.u32 %v434, %v593
      %v595 = vrot.slane %v444, 1
      %v596 = vor.u32 %v441, %v595
      %v597 = vrot.slane %v451, 1
      %v598 = vor.u32 %v448, %v597
      %v599 = vrot.slane %v458, 1
      %v600 = vor.u32 %v455, %v599
      %v601 = vrot.slane %v465, 1
      %v602 = vor.u32 %v462, %v601
      %v603 = vrot.slane %v472, 1
      %v604 = vor.u32 %v469, %v603
      %v605 = vrot.slane %v479, 1
      %v606 = vor.u32 %v476, %v605
      %v607 = vrot.slane %v486, 1
      %v608 = vor.u32 %v483, %v607
      %v609 = vrot.slane %v493, 1
      %v610 = vor.u32 %v490, %v609
      %vm627 = vsmask.f32 7424
      %vm628 = vmand %vm512, %vm627
      %v629 = vld [vmem:[#allocation2 + $0x10] sm:$0xff]
      %v630 = vsel %vm628, %v580, %v629
      %631 = vst [vmem:[#allocation2 + $0x10] sm:$0xff] %v630
      %v632 = vld [vmem:[#allocation2 + $0x28] sm:$0xff]
      %v633 = vsel %vm628, %v582, %v632
      %634 = vst [vmem:[#allocation2 + $0x28] sm:$0xff] %v633
      %v635 = vld [vmem:[#allocation2 + $0x40] sm:$0xff]
      %v636 = vsel %vm628, %v584, %v635
      %637 = vst [vmem:[#allocation2 + $0x40] sm:$0xff] %v636
      %v638 = vld [vmem:[#allocation2 + $0x58] sm:$0xff]
      %v639 = vsel %vm628, %v586, %v638
      %640 = vst [vmem:[#allocation2 + $0x58] sm:$0xff] %v639
      %v641 = vld [vmem:[#allocation2 + $0x70] sm:$0xff]
      %v642 = vsel %vm628, %v588, %v641
      %643 = vst [vmem:[#allocation2 + $0x70] sm:$0xff] %v642
      %v644 = vld [vmem:[#allocation2 + $0x88] sm:$0xff]
      %v645 = vsel %vm628, %v590, %v644
      %646 = vst [vmem:[#allocation2 + $0x88] sm:$0xff] %v645
      %v647 = vld [vmem:[#allocation2 + $0xa0] sm:$0xff]
      %v648 = vsel %vm628, %v592, %v647
      %649 = vst [vmem:[#allocation2 + $0xa0] sm:$0xff] %v648
      %v650 = vld [vmem:[#allocation2 + $0xb8] sm:$0xff]
      %v651 = vsel %vm628, %v594, %v650
      %652 = vst [vmem:[#allocation2 + $0xb8] sm:$0xff] %v651
      %v653 = vld [vmem:[#allocation2 + $0xd0] sm:$0xff]
      %v654 = vsel %vm628, %v596, %v653
      %655 = vst [vmem:[#allocation2 + $0xd0] sm:$0xff] %v654
      %v656 = vld [vmem:[#allocation2 + $0xe8] sm:$0xff]
      %v657 = vsel %vm628, %v598, %v656
      %658 = vst [vmem:[#allocation2 + $0xe8] sm:$0xff] %v657
      %v659 = vld [vmem:[#allocation2 + $0x100] sm:$0xff]
      %v660 = vsel %vm628, %v600, %v659
      %661 = vst [vmem:[#allocation2 + $0x100] sm:$0xff] %v660
      %v662 = vld [vmem:[#allocation2 + $0x118] sm:$0xff]
      %v663 = vsel %vm628, %v602, %v662
      %664 = vst [vmem:[#allocation2 + $0x118] sm:$0xff] %v663
      %v665 = vld [vmem:[#allocation2 + $0x130] sm:$0xff]
      %v666 = vsel %vm628, %v604, %v665
      %667 = vst [vmem:[#allocation2 + $0x130] sm:$0xff] %v666
      %v668 = vld [vmem:[#allocation2 + $0x148] sm:$0xff]
      %v669 = vsel %vm628, %v606, %v668
      %670 = vst [vmem:[#allocation2 + $0x148] sm:$0xff] %v669
      %v671 = vld [vmem:[#allocation2 + $0x160] sm:$0xff]
      %v672 = vsel %vm628, %v608, %v671
      %673 = vst [vmem:[#allocation2 + $0x160] sm:$0xff] %v672
      %v674 = vld [vmem:[#allocation2 + $0x178] sm:$0xff]
      %v675 = vsel %vm628, %v610, %v674
      %676 = vst [vmem:[#allocation2 + $0x178] sm:$0xff] %v675
      %v677 = vld [vmem:[#allocation2] sm:$0xff]
      %v678 = vld [vmem:[#allocation2 + $0x8] sm:$0xff]
      %v679 = vld [vmem:[#allocation2 + $0x10] sm:$0xff]
      %v680 = vld [vmem:[#allocation2 + $0x18] sm:$0xff]
      %v681 = vld [vmem:[#allocation2 + $0x20] sm:$0xff]
      %v682 = vld [vmem:[#allocation2 + $0x28] sm:$0xff]
      %v683 = vld [vmem:[#allocation2 + $0x30] sm:$0xff]
      %v684 = vld [vmem:[#allocation2 + $0x38] sm:$0xff]
      %v685 = vld [vmem:[#allocation2 + $0x40] sm:$0xff]
      %v686 = vld [vmem:[#allocation2 + $0x48] sm:$0xff]
      %v687 = vld [vmem:[#allocation2 + $0x50] sm:$0xff]
      %v688 = vld [vmem:[#allocation2 + $0x58] sm:$0xff]
      %v689 = vld [vmem:[#allocation2 + $0x60] sm:$0xff]
      %v690 = vld [vmem:[#allocation2 + $0x68] sm:$0xff]
      %v691 = vld [vmem:[#allocation2 + $0x70] sm:$0xff]
      %v692 = vld [vmem:[#allocation2 + $0x78] sm:$0xff]
      %v693 = vld [vmem:[#allocation2 + $0x80] sm:$0xff]
      %v694 = vld [vmem:[#allocation2 + $0x88] sm:$0xff]
      %v695 = vld [vmem:[#allocation2 + $0x90] sm:$0xff]
      %v696 = vld [vmem:[#allocation2 + $0x98] sm:$0xff]
      %v697 = vld [vmem:[#allocation2 + $0xa0] sm:$0xff]
      %v698 = vld [vmem:[#allocation2 + $0xa8] sm:$0xff]
      %v699 = vld [vmem:[#allocation2 + $0xb0] sm:$0xff]
      %v700 = vld [vmem:[#allocation2 + $0xb8] sm:$0xff]
      %v701 = vld [vmem:[#allocation2 + $0xc0] sm:$0xff]
      %v702 = vld [vmem:[#allocation2 + $0xc8] sm:$0xff]
      %v703 = vld [vmem:[#allocation2 + $0xd0] sm:$0xff]
      %v704 = vld [vmem:[#allocation2 + $0xd8] sm:$0xff]
      %v705 = vld [vmem:[#allocation2 + $0xe0] sm:$0xff]
      %v706 = vld [vmem:[#allocation2 + $0xe8] sm:$0xff]
      %v707 = vld [vmem:[#allocation2 + $0xf0] sm:$0xff]
      %v708 = vld [vmem:[#allocation2 + $0xf8] sm:$0xff]
      %v709 = vld [vmem:[#allocation2 + $0x100] sm:$0xff]
      %v710 = vld [vmem:[#allocation2 + $0x108] sm:$0xff]
      %v711 = vld [vmem:[#allocation2 + $0x110] sm:$0xff]
      %v712 = vld [vmem:[#allocation2 + $0x118] sm:$0xff]
      %v713 = vld [vmem:[#allocation2 + $0x120] sm:$0xff]
      %v714 = vld [vmem:[#allocation2 + $0x128] sm:$0xff]
      %v715 = vld [vmem:[#allocation2 + $0x130] sm:$0xff]
      %v716 = vld [vmem:[#allocation2 + $0x138] sm:$0xff]
      %v717 = vld [vmem:[#allocation2 + $0x140] sm:$0xff]
      %v718 = vld [vmem:[#allocation2 + $0x148] sm:$0xff]
      %v719 = vld [vmem:[#allocation2 + $0x150] sm:$0xff]
      %v720 = vld [vmem:[#allocation2 + $0x158] sm:$0xff]
      %v721 = vld [vmem:[#allocation2 + $0x160] sm:$0xff]
      %v722 = vld [vmem:[#allocation2 + $0x168] sm:$0xff]
      %v723 = vld [vmem:[#allocation2 + $0x170] sm:$0xff]
      %v724 = vld [vmem:[#allocation2 + $0x178] sm:$0xff]
      %v725 = vld [vmem:[%s1] sm:$0xf]
      %v726 = vld [vmem:[%s1 + $0x4] sm:$0xf]
      %v727 = vld [vmem:[%s1 + $0x8] sm:$0xf]
      %v728 = vld [vmem:[%s1 + $0xc] sm:$0xf]
      %v729 = vld [vmem:[%s1 + $0x10] sm:$0xf]
      %v730 = vld [vmem:[%s1 + $0x14] sm:$0xf]
      %v731 = vld [vmem:[%s1 + $0x18] sm:$0xf]
      %v732 = vld [vmem:[%s1 + $0x1c] sm:$0xf]
      %v733 = vld [vmem:[%s1 + $0x20] sm:$0xf]
      %v734 = vld [vmem:[%s1 + $0x24] sm:$0xf]
      %v735 = vld [vmem:[%s1 + $0x28] sm:$0xf]
      %v736 = vld [vmem:[%s1 + $0x2c] sm:$0xf]
      %v737 = vld [vmem:[%s1 + $0x30] sm:$0xf]
      %v738 = vld [vmem:[%s1 + $0x34] sm:$0xf]
      %v739 = vld [vmem:[%s1 + $0x38] sm:$0xf]
      %v740 = vld [vmem:[%s1 + $0x3c] sm:$0xf]
      %v741 = vld [vmem:[%s1 + $0x40] sm:$0xf]
      %v742 = vld [vmem:[%s1 + $0x44] sm:$0xf]
      %v743 = vld [vmem:[%s1 + $0x48] sm:$0xf]
      %v744 = vld [vmem:[%s1 + $0x4c] sm:$0xf]
      %v745 = vld [vmem:[%s1 + $0x50] sm:$0xf]
      %v746 = vld [vmem:[%s1 + $0x54] sm:$0xf]
      %v747 = vld [vmem:[%s1 + $0x58] sm:$0xf]
      %v748 = vld [vmem:[%s1 + $0x5c] sm:$0xf]
      %v749 = vld [vmem:[%s1 + $0x60] sm:$0xf]
      %v750 = vld [vmem:[%s1 + $0x64] sm:$0xf]
      %v751 = vld [vmem:[%s1 + $0x68] sm:$0xf]
      %v752 = vld [vmem:[%s1 + $0x6c] sm:$0xf]
      %v753 = vld [vmem:[%s1 + $0x70] sm:$0xf]
      %v754 = vld [vmem:[%s1 + $0x74] sm:$0xf]
      %v755 = vld [vmem:[%s1 + $0x78] sm:$0xf]
      %v756 = vld [vmem:[%s1 + $0x7c] sm:$0xf]
      %v757 = vld [vmem:[%s1 + $0x80] sm:$0xf]
      %v758 = vld [vmem:[%s1 + $0x84] sm:$0xf]
      %v759 = vld [vmem:[%s1 + $0x88] sm:$0xf]
      %v760 = vld [vmem:[%s1 + $0x8c] sm:$0xf]
      %v761 = vld [vmem:[%s1 + $0x90] sm:$0xf]
      %v762 = vld [vmem:[%s1 + $0x94] sm:$0xf]
      %v763 = vld [vmem:[%s1 + $0x98] sm:$0xf]
      %v764 = vld [vmem:[%s1 + $0x9c] sm:$0xf]
      %v765 = vld [vmem:[%s1 + $0xa0] sm:$0xf]
      %v766 = vld [vmem:[%s1 + $0xa4] sm:$0xf]
      %v767 = vld [vmem:[%s1 + $0xa8] sm:$0xf]
      %v768 = vld [vmem:[%s1 + $0xac] sm:$0xf]
      %v769 = vld [vmem:[%s1 + $0xb0] sm:$0xf]
      %v770 = vld [vmem:[%s1 + $0xb4] sm:$0xf]
      %v771 = vld [vmem:[%s1 + $0xb8] sm:$0xf]
      %v772 = vld [vmem:[%s1 + $0xbc] sm:$0xf]
      %v773 = vld [vmem:[%s2] sm:$0x1]
      %v775 = vlaneseq
      %v776 = vshrl.u32 %v775, 7
      %v777 = vsub.s32 0, %v776
      %v778 = vrot.slane %v773, %v777
      %v828 = vunpack.c.l.b16 %v725
      %v829 = vunpack.c.l.b16 %v726
      %v830 = vunpack.c.l.b16 %v727
      %v831 = vunpack.c.l.b16 %v728
      %v832 = vunpack.c.l.b16 %v729
      %v833 = vunpack.c.l.b16 %v730
      %v834 = vunpack.c.l.b16 %v731
      %v835 = vunpack.c.l.b16 %v732
      %v836 = vunpack.c.l.b16 %v733
      %v837 = vunpack.c.l.b16 %v734
      %v838 = vunpack.c.l.b16 %v735
      %v839 = vunpack.c.l.b16 %v736
      %v840 = vunpack.c.l.b16 %v737
      %v841 = vunpack.c.l.b16 %v738
      %v842 = vunpack.c.l.b16 %v739
      %v843 = vunpack.c.l.b16 %v740
      %v844 = vunpack.c.l.b16 %v741
      %v845 = vunpack.c.l.b16 %v742
      %v846 = vunpack.c.l.b16 %v743
      %v847 = vunpack.c.l.b16 %v744
      %v848 = vunpack.c.l.b16 %v745
      %v849 = vunpack.c.l.b16 %v746
      %v850 = vunpack.c.l.b16 %v747
      %v851 = vunpack.c.l.b16 %v748
      %v852 = vunpack.c.l.b16 %v749
      %v853 = vunpack.c.l.b16 %v750
      %v854 = vunpack.c.l.b16 %v751
      %v855 = vunpack.c.l.b16 %v752
      %v856 = vunpack.c.l.b16 %v753
      %v857 = vunpack.c.l.b16 %v754
      %v858 = vunpack.c.l.b16 %v755
      %v859 = vunpack.c.l.b16 %v756
      %v860 = vunpack.c.l.b16 %v757
      %v861 = vunpack.c.l.b16 %v758
      %v862 = vunpack.c.l.b16 %v759
      %v863 = vunpack.c.l.b16 %v760
      %v864 = vunpack.c.l.b16 %v761
      %v865 = vunpack.c.l.b16 %v762
      %v866 = vunpack.c.l.b16 %v763
      %v867 = vunpack.c.l.b16 %v764
      %v868 = vunpack.c.l.b16 %v765
      %v869 = vunpack.c.l.b16 %v766
      %v870 = vunpack.c.l.b16 %v767
      %v871 = vunpack.c.l.b16 %v768
      %v872 = vunpack.c.l.b16 %v769
      %v873 = vunpack.c.l.b16 %v770
      %v874 = vunpack.c.l.b16 %v771
      %v875 = vunpack.c.l.b16 %v772
      %v876 = vpack.c.b16 %v829, %v828
      %v877 = vpack.c.b16 %v831, %v830
      %v878 = vpack.c.b16 %v833, %v832
      %v879 = vpack.c.b16 %v835, %v834
      %v880 = vpack.c.b16 %v837, %v836
      %v881 = vpack.c.b16 %v839, %v838
      %v882 = vpack.c.b16 %v841, %v840
      %v883 = vpack.c.b16 %v843, %v842
      %v884 = vpack.c.b16 %v845, %v844
      %v885 = vpack.c.b16 %v847, %v846
      %v886 = vpack.c.b16 %v849, %v848
      %v887 = vpack.c.b16 %v851, %v850
      %v888 = vpack.c.b16 %v853, %v852
      %v889 = vpack.c.b16 %v855, %v854
      %v890 = vpack.c.b16 %v857, %v856
      %v891 = vpack.c.b16 %v859, %v858
      %v892 = vpack.c.b16 %v861, %v860
      %v893 = vpack.c.b16 %v863, %v862
      %v894 = vpack.c.b16 %v865, %v864
      %v895 = vpack.c.b16 %v867, %v866
      %v896 = vpack.c.b16 %v869, %v868
      %v897 = vpack.c.b16 %v871, %v870
      %v898 = vpack.c.b16 %v873, %v872
      %v899 = vpack.c.b16 %v875, %v874
      %924 = vmatprep.subr.bf16.mxu0 0
      %925 = vmatpush1.bf16.msra.mxu0 %v876
      %926 = vmatprep.subr.bf16.mxu0 0
      %927 = vmatpush1.bf16.msra.mxu0 %v877
      %928 = vmatprep.subr.bf16.mxu0 0
      %929 = vmatpush1.bf16.msra.mxu0 %v878
      %930 = vmatprep.subr.bf16.mxu0 0
      %931 = vmatpush1.bf16.msra.mxu0 %v879
      %932 = vmatprep.subr.bf16.mxu0 0
      %933 = vmatpush1.bf16.msra.mxu0 %v880
      %934 = vmatprep.subr.bf16.mxu0 0
      %935 = vmatpush1.bf16.msra.mxu0 %v881
      %936 = vmatprep.subr.bf16.mxu0 0
      %937 = vmatpush1.bf16.msra.mxu0 %v882
      %938 = vmatprep.subr.bf16.mxu0 0
      %939 = vmatpush1.bf16.msra.mxu0 %v883
      %940 = vmatprep.subr.bf16.mxu0 0
      %941 = vmatpush1.bf16.msra.mxu0 %v884
      %942 = vmatprep.subr.bf16.mxu0 0
      %943 = vmatpush1.bf16.msra.mxu0 %v885
      %944 = vmatprep.subr.bf16.mxu0 0
      %945 = vmatpush1.bf16.msra.mxu0 %v886
      %946 = vmatprep.subr.bf16.mxu0 0
      %947 = vmatpush1.bf16.msra.mxu0 %v887
      %948 = vmatprep.subr.bf16.mxu0 0
      %949 = vmatpush1.bf16.msra.mxu0 %v888
      %950 = vmatprep.subr.bf16.mxu0 0
      %951 = vmatpush1.bf16.msra.mxu0 %v889
      %952 = vmatprep.subr.bf16.mxu0 0
      %953 = vmatpush1.bf16.msra.mxu0 %v890
      %954 = vmatprep.subr.bf16.mxu0 0
      %955 = vmatpush1.bf16.msra.mxu0 %v891
      %956 = vmatprep.mubr.bf16.mxu0 %v678
      %957 = vmatmul.mubr.bf16.gmra.mrb[0].mxu0 %v677
      %v958 = vpop.f32.mrb[0].mxu0
      %v959 = vadd.f32 %v778, %v958
      %v960 = vpop.f32.mrb[0].mxu0
      %v961 = vpop.f32.mrb[0].mxu0
      %v962 = vadd.f32 %v778, %v961
      %v963 = vpop.f32.mrb[0].mxu0
      %964 = vmatprep.mubr.bf16.mxu0 %v681
      %965 = vmatmul.mubr.bf16.gmra.mrb[0].mxu0 %v680
      %v966 = vpop.f32.mrb[0].mxu0
      %v967 = vadd.f32 %v778, %v966
      %v968 = vpop.f32.mrb[0].mxu0
      %v969 = vpop.f32.mrb[0].mxu0
      %v970 = vadd.f32 %v778, %v969
      %v971 = vpop.f32.mrb[0].mxu0
      %972 = vmatprep.mubr.bf16.mxu0 %v684
      %973 = vmatmul.mubr.bf16.gmra.mrb[0].mxu0 %v683
      %v974 = vpop.f32.mrb[0].mxu0
      %v975 = vadd.f32 %v778, %v974
      %v976 = vpop.f32.mrb[0].mxu0
      %v977 = vpop.f32.mrb[0].mxu0
      %v978 = vadd.f32 %v778, %v977
      %v979 = vpop.f32.mrb[0].mxu0
      %980 = vmatprep.mubr.bf16.mxu0 %v687
      %981 = vmatmul.mubr.bf16.gmra.mrb[0].mxu0 %v686
      %v982 = vpop.f32.mrb[0].mxu0
      %v983 = vadd.f32 %v778, %v982
      %v984 = vpop.f32.mrb[0].mxu0
      %v985 = vpop.f32.mrb[0].mxu0
      %v986 = vadd.f32 %v778, %v985
      %v987 = vpop.f32.mrb[0].mxu0
      %988 = vmatprep.mubr.bf16.mxu0 %v690
      %989 = vmatmul.mubr.bf16.gmra.mrb[0].mxu0 %v689
      %v990 = vpop.f32.mrb[0].mxu0
      %v991 = vadd.f32 %v778, %v990
      %v992 = vpop.f32.mrb[0].mxu0
      %v993 = vpop.f32.mrb[0].mxu0
      %v994 = vadd.f32 %v778, %v993
      %v995 = vpop.f32.mrb[0].mxu0
      %996 = vmatprep.mubr.bf16.mxu0 %v693
      %997 = vmatmul.mubr.bf16.gmra.mrb[0].mxu0 %v692
      %v998 = vpop.f32.mrb[0].mxu0
      %v999 = vadd.f32 %v778, %v998
      %v1000 = vpop.f32.mrb[0].mxu0
      %v1001 = vpop.f32.mrb[0].mxu0
      %v1002 = vadd.f32 %v778, %v1001
      %v1003 = vpop.f32.mrb[0].mxu0
      %1004 = vmatprep.mubr.bf16.mxu0 %v696
      %1005 = vmatmul.mubr.bf16.gmra.mrb[0].mxu0 %v695
      %v1006 = vpop.f32.mrb[0].mxu0
      %v1007 = vadd.f32 %v778, %v1006
      %v1008 = vpop.f32.mrb[0].mxu0
      %v1009 = vpop.f32.mrb[0].mxu0
      %v1010 = vadd.f32 %v778, %v1009
      %v1011 = vpop.f32.mrb[0].mxu0
      %1012 = vmatprep.mubr.bf16.mxu0 %v699
      %1013 = vmatmul.mubr.bf16.gmra.mrb[0].mxu0 %v698
      %v1014 = vpop.f32.mrb[0].mxu0
      %v1015 = vadd.f32 %v778, %v1014
      %v1016 = vpop.f32.mrb[0].mxu0
      %v1017 = vpop.f32.mrb[0].mxu0
      %v1018 = vadd.f32 %v778, %v1017
      %v1019 = vpop.f32.mrb[0].mxu0
      %1020 = vmatprep.mubr.bf16.mxu0 %v702
      %1021 = vmatmul.mubr.bf16.gmra.mrb[0].mxu0 %v701
      %v1022 = vpop.f32.mrb[0].mxu0
      %v1023 = vadd.f32 %v778, %v1022
      %v1024 = vpop.f32.mrb[0].mxu0
      %v1025 = vpop.f32.mrb[0].mxu0
      %v1026 = vadd.f32 %v778, %v1025
      %v1027 = vpop.f32.mrb[0].mxu0
      %1028 = vmatprep.mubr.bf16.mxu0 %v705
      %1029 = vmatmul.mubr.bf16.gmra.mrb[0].mxu0 %v704
      %v1030 = vpop.f32.mrb[0].mxu0
      %v1031 = vadd.f32 %v778, %v1030
      %v1032 = vpop.f32.mrb[0].mxu0
      %v1033 = vpop.f32.mrb[0].mxu0
      %v1034 = vadd.f32 %v778, %v1033
      %v1035 = vpop.f32.mrb[0].mxu0
      %1036 = vmatprep.mubr.bf16.mxu0 %v708
      %1037 = vmatmul.mubr.bf16.gmra.mrb[0].mxu0 %v707
      %v1038 = vpop.f32.mrb[0].mxu0
      %v1039 = vadd.f32 %v778, %v1038
      %v1040 = vpop.f32.mrb[0].mxu0
      %v1041 = vpop.f32.mrb[0].mxu0
      %v1042 = vadd.f32 %v778, %v1041
      %v1043 = vpop.f32.mrb[0].mxu0
      %1044 = vmatprep.mubr.bf16.mxu0 %v711
      %1045 = vmatmul.mubr.bf16.gmra.mrb[0].mxu0 %v710
      %v1046 = vpop.f32.mrb[0].mxu0
      %v1047 = vadd.f32 %v778, %v1046
      %v1048 = vpop.f32.mrb[0].mxu0
      %v1049 = vpop.f32.mrb[0].mxu0
      %v1050 = vadd.f32 %v778, %v1049
      %v1051 = vpop.f32.mrb[0].mxu0
      %1052 = vmatprep.mubr.bf16.mxu0 %v714
      %1053 = vmatmul.mubr.bf16.gmra.mrb[0].mxu0 %v713
      %v1054 = vpop.f32.mrb[0].mxu0
      %v1055 = vadd.f32 %v778, %v1054
      %v1056 = vpop.f32.mrb[0].mxu0
      %v1057 = vpop.f32.mrb[0].mxu0
      %v1058 = vadd.f32 %v778, %v1057
      %v1059 = vpop.f32.mrb[0].mxu0
      %1060 = vmatprep.mubr.bf16.mxu0 %v717
      %1061 = vmatmul.mubr.bf16.gmra.mrb[0].mxu0 %v716
      %v1062 = vpop.f32.mrb[0].mxu0
      %v1063 = vadd.f32 %v778, %v1062
      %v1064 = vpop.f32.mrb[0].mxu0
      %v1065 = vpop.f32.mrb[0].mxu0
      %v1066 = vadd.f32 %v778, %v1065
      %v1067 = vpop.f32.mrb[0].mxu0
      %1068 = vmatprep.mubr.bf16.mxu0 %v720
      %1069 = vmatmul.mubr.bf16.gmra.mrb[0].mxu0 %v719
      %v1070 = vpop.f32.mrb[0].mxu0
      %v1071 = vadd.f32 %v778, %v1070
      %v1072 = vpop.f32.mrb[0].mxu0
      %v1073 = vpop.f32.mrb[0].mxu0
      %v1074 = vadd.f32 %v778, %v1073
      %v1075 = vpop.f32.mrb[0].mxu0
      %1076 = vmatprep.mubr.bf16.mxu0 %v723
      %1077 = vmatmul.mubr.bf16.gmra.mrb[0].mxu0 %v722
      %v1078 = vpop.f32.mrb[0].mxu0
      %v1079 = vadd.f32 %v778, %v1078
      %v1080 = vpop.f32.mrb[0].mxu0
      %v1081 = vpop.f32.mrb[0].mxu0
      %v1082 = vadd.f32 %v778, %v1081
      %v1083 = vpop.f32.mrb[0].mxu0
      %1084 = vdwg.mxu0
      %1085 = vmatprep.subr.bf16.mxu0 0
      %1086 = vmatpush1.bf16.msra.mxu0 %v892
      %1087 = vmatprep.subr.bf16.mxu0 0
      %1088 = vmatpush1.bf16.msra.mxu0 %v893
      %1089 = vmatprep.subr.bf16.mxu0 0
      %1090 = vmatpush1.bf16.msra.mxu0 %v894
      %1091 = vmatprep.subr.bf16.mxu0 0
      %1092 = vmatpush1.bf16.msra.mxu0 %v895
      %1093 = vmatprep.subr.bf16.mxu0 0
      %1094 = vmatpush1.bf16.msra.mxu0 %v896
      %1095 = vmatprep.subr.bf16.mxu0 0
      %1096 = vmatpush1.bf16.msra.mxu0 %v897
      %1097 = vmatprep.subr.bf16.mxu0 0
      %1098 = vmatpush1.bf16.msra.mxu0 %v898
      %1099 = vmatprep.subr.bf16.mxu0 0
      %1100 = vmatpush1.bf16.msra.mxu0 %v899
      %1101 = vmatprep.subr.bf16.mxu0 0
      %1102 = vmatpush1.bf16.msra.mxu0 0
      %1103 = vmatprep.subr.bf16.mxu0 0
      %1104 = vmatpush1.bf16.msra.mxu0 0
      %1105 = vmatprep.subr.bf16.mxu0 0
      %1106 = vmatpush1.bf16.msra.mxu0 0
      %1107 = vmatprep.subr.bf16.mxu0 0
      %1108 = vmatpush1.bf16.msra.mxu0 0
      %1109 = vmatprep.subr.bf16.mxu0 0
      %1110 = vmatpush1.bf16.msra.mxu0 0
      %1111 = vmatprep.subr.bf16.mxu0 0
      %1112 = vmatpush1.bf16.msra.mxu0 0
      %1113 = vmatprep.subr.bf16.mxu0 0
      %1114 = vmatpush1.bf16.msra.mxu0 0
      %1115 = vmatprep.subr.bf16.mxu0 0
      %1116 = vmatpush1.bf16.msra.mxu0 0
      %1117 = vmatprep.mubr.bf16.mxu0 0
      %1118 = vmatmul.mubr.bf16.gmra.mrb[0].mxu0 %v679
      %v1119 = vpop.f32.mrb[0].mxu0
      %v1120 = vadd.f32 %v959, %v1119
      %v1121 = vpop.f32.mrb[0].mxu0
      %v1122 = vpop.f32.mrb[0].mxu0
      %v1123 = vadd.f32 %v962, %v1122
      %v1124 = vpop.f32.mrb[0].mxu0
      %1125 = vmatprep.mubr.bf16.mxu0 0
      %1126 = vmatmul.mubr.bf16.gmra.mrb[0].mxu0 %v682
      %v1127 = vpop.f32.mrb[0].mxu0
      %v1128 = vadd.f32 %v967, %v1127
      %v1129 = vpop.f32.mrb[0].mxu0
      %v1130 = vpop.f32.mrb[0].mxu0
      %v1131 = vadd.f32 %v970, %v1130
      %v1132 = vpop.f32.mrb[0].mxu0
      %1133 = vmatprep.mubr.bf16.mxu0 0
      %1134 = vmatmul.mubr.bf16.gmra.mrb[0].mxu0 %v685
      %v1135 = vpop.f32.mrb[0].mxu0
      %v1136 = vadd.f32 %v975, %v1135
      %v1137 = vpop.f32.mrb[0].mxu0
      %v1138 = vpop.f32.mrb[0].mxu0
      %v1139 = vadd.f32 %v978, %v1138
      %v1140 = vpop.f32.mrb[0].mxu0
      %1141 = vmatprep.mubr.bf16.mxu0 0
      %1142 = vmatmul.mubr.bf16.gmra.mrb[0].mxu0 %v688
      %v1143 = vpop.f32.mrb[0].mxu0
      %v1144 = vadd.f32 %v983, %v1143
      %v1145 = vpop.f32.mrb[0].mxu0
      %v1146 = vpop.f32.mrb[0].mxu0
      %v1147 = vadd.f32 %v986, %v1146
      %v1148 = vpop.f32.mrb[0].mxu0
      %1149 = vmatprep.mubr.bf16.mxu0 0
      %1150 = vmatmul.mubr.bf16.gmra.mrb[0].mxu0 %v691
      %v1151 = vpop.f32.mrb[0].mxu0
      %v1152 = vadd.f32 %v991, %v1151
      %v1153 = vpop.f32.mrb[0].mxu0
      %v1154 = vpop.f32.mrb[0].mxu0
      %v1155 = vadd.f32 %v994, %v1154
      %v1156 = vpop.f32.mrb[0].mxu0
      %1157 = vmatprep.mubr.bf16.mxu0 0
      %1158 = vmatmul.mubr.bf16.gmra.mrb[0].mxu0 %v694
      %v1159 = vpop.f32.mrb[0].mxu0
      %v1160 = vadd.f32 %v999, %v1159
      %v1161 = vpop.f32.mrb[0].mxu0
      %v1162 = vpop.f32.mrb[0].mxu0
      %v1163 = vadd.f32 %v1002, %v1162
      %v1164 = vpop.f32.mrb[0].mxu0
      %1165 = vmatprep.mubr.bf16.mxu0 0
      %1166 = vmatmul.mubr.bf16.gmra.mrb[0].mxu0 %v697
      %v1167 = vpop.f32.mrb[0].mxu0
      %v1168 = vadd.f32 %v1007, %v1167
      %v1169 = vpop.f32.mrb[0].mxu0
      %v1170 = vpop.f32.mrb[0].mxu0
      %v1171 = vadd.f32 %v1010, %v1170
      %v1172 = vpop.f32.mrb[0].mxu0
      %1173 = vmatprep.mubr.bf16.mxu0 0
      %1174 = vmatmul.mubr.bf16.gmra.mrb[0].mxu0 %v700
      %v1175 = vpop.f32.mrb[0].mxu0
      %v1176 = vadd.f32 %v1015, %v1175
      %v1177 = vpop.f32.mrb[0].mxu0
      %v1178 = vpop.f32.mrb[0].mxu0
      %v1179 = vadd.f32 %v1018, %v1178
      %v1180 = vpop.f32.mrb[0].mxu0
      %1181 = vmatprep.mubr.bf16.mxu0 0
      %1182 = vmatmul.mubr.bf16.gmra.mrb[0].mxu0 %v703
      %v1183 = vpop.f32.mrb[0].mxu0
      %v1184 = vadd.f32 %v1023, %v1183
      %v1185 = vpop.f32.mrb[0].mxu0
      %v1186 = vpop.f32.mrb[0].mxu0
      %v1187 = vadd.f32 %v1026, %v1186
      %v1188 = vpop.f32.mrb[0].mxu0
      %1189 = vmatprep.mubr.bf16.mxu0 0
      %1190 = vmatmul.mubr.bf16.gmra.mrb[0].mxu0 %v706
      %v1191 = vpop.f32.mrb[0].mxu0
      %v1192 = vadd.f32 %v1031, %v1191
      %v1193 = vpop.f32.mrb[0].mxu0
      %v1194 = vpop.f32.mrb[0].mxu0
      %v1195 = vadd.f32 %v1034, %v1194
      %v1196 = vpop.f32.mrb[0].mxu0
      %1197 = vmatprep.mubr.bf16.mxu0 0
      %1198 = vmatmul.mubr.bf16.gmra.mrb[0].mxu0 %v709
      %v1199 = vpop.f32.mrb[0].mxu0
      %v1200 = vadd.f32 %v1039, %v1199
      %v1201 = vpop.f32.mrb[0].mxu0
      %v1202 = vpop.f32.mrb[0].mxu0
      %v1203 = vadd.f32 %v1042, %v1202
      %v1204 = vpop.f32.mrb[0].mxu0
      %1205 = vmatprep.mubr.bf16.mxu0 0
      %1206 = vmatmul.mubr.bf16.gmra.mrb[0].mxu0 %v712
      %v1207 = vpop.f32.mrb[0].mxu0
      %v1208 = vadd.f32 %v1047, %v1207
      %v1209 = vpop.f32.mrb[0].mxu0
      %v1210 = vpop.f32.mrb[0].mxu0
      %v1211 = vadd.f32 %v1050, %v1210
      %v1212 = vpop.f32.mrb[0].mxu0
      %1213 = vmatprep.mubr.bf16.mxu0 0
      %1214 = vmatmul.mubr.bf16.gmra.mrb[0].mxu0 %v715
      %v1215 = vpop.f32.mrb[0].mxu0
      %v1216 = vadd.f32 %v1055, %v1215
      %v1217 = vpop.f32.mrb[0].mxu0
      %v1218 = vpop.f32.mrb[0].mxu0
      %v1219 = vadd.f32 %v1058, %v1218
      %v1220 = vpop.f32.mrb[0].mxu0
      %1221 = vmatprep.mubr.bf16.mxu0 0
      %1222 = vmatmul.mubr.bf16.gmra.mrb[0].mxu0 %v718
      %v1223 = vpop.f32.mrb[0].mxu0
      %v1224 = vadd.f32 %v1063, %v1223
      %v1225 = vpop.f32.mrb[0].mxu0
      %v1226 = vpop.f32.mrb[0].mxu0
      %v1227 = vadd.f32 %v1066, %v1226
      %v1228 = vpop.f32.mrb[0].mxu0
      %1229 = vmatprep.mubr.bf16.mxu0 0
      %1230 = vmatmul.mubr.bf16.gmra.mrb[0].mxu0 %v721
      %v1231 = vpop.f32.mrb[0].mxu0
      %v1232 = vadd.f32 %v1071, %v1231
      %v1233 = vpop.f32.mrb[0].mxu0
      %v1234 = vpop.f32.mrb[0].mxu0
      %v1235 = vadd.f32 %v1074, %v1234
      %v1236 = vpop.f32.mrb[0].mxu0
      %1237 = vmatprep.mubr.bf16.mxu0 0
      %1238 = vmatmul.mubr.bf16.gmra.mrb[0].mxu0 %v724
      %v1239 = vpop.f32.mrb[0].mxu0
      %v1240 = vadd.f32 %v1079, %v1239
      %v1241 = vpop.f32.mrb[0].mxu0
      %v1242 = vpop.f32.mrb[0].mxu0
      %v1243 = vadd.f32 %v1082, %v1242
      %v1244 = vpop.f32.mrb[0].mxu0
      %1245 = vdwg.mxu0
      %vm1246 = vcmp.gt.f32.partialorder %v1120, 0.0
      %vm1247 = vcmp.gt.f32.partialorder %v1123, 0.0
      %vm1248 = vcmp.gt.f32.partialorder %v1128, 0.0
      %vm1249 = vcmp.gt.f32.partialorder %v1131, 0.0
      %vm1250 = vcmp.gt.f32.partialorder %v1136, 0.0
      %vm1251 = vcmp.gt.f32.partialorder %v1139, 0.0
      %vm1252 = vcmp.gt.f32.partialorder %v1144, 0.0
      %vm1253 = vcmp.gt.f32.partialorder %v1147, 0.0
      %vm1254 = vcmp.gt.f32.partialorder %v1152, 0.0
      %vm1255 = vcmp.gt.f32.partialorder %v1155, 0.0
      %vm1256 = vcmp.gt.f32.partialorder %v1160, 0.0
      %vm1257 = vcmp.gt.f32.partialorder %v1163, 0.0
      %vm1258 = vcmp.gt.f32.partialorder %v1168, 0.0
      %vm1259 = vcmp.gt.f32.partialorder %v1171, 0.0
      %vm1260 = vcmp.gt.f32.partialorder %v1176, 0.0
      %vm1261 = vcmp.gt.f32.partialorder %v1179, 0.0
      %vm1262 = vcmp.gt.f32.partialorder %v1184, 0.0
      %vm1263 = vcmp.gt.f32.partialorder %v1187, 0.0
      %vm1264 = vcmp.gt.f32.partialorder %v1192, 0.0
      %vm1265 = vcmp.gt.f32.partialorder %v1195, 0.0
      %vm1266 = vcmp.gt.f32.partialorder %v1200, 0.0
      %vm1267 = vcmp.gt.f32.partialorder %v1203, 0.0
      %vm1268 = vcmp.gt.f32.partialorder %v1208, 0.0
      %vm1269 = vcmp.gt.f32.partialorder %v1211, 0.0
      %vm1270 = vcmp.gt.f32.partialorder %v1216, 0.0
      %vm1271 = vcmp.gt.f32.partialorder %v1219, 0.0
      %vm1272 = vcmp.gt.f32.partialorder %v1224, 0.0
      %vm1273 = vcmp.gt.f32.partialorder %v1227, 0.0
      %vm1274 = vcmp.gt.f32.partialorder %v1232, 0.0
      %vm1275 = vcmp.gt.f32.partialorder %v1235, 0.0
      %vm1276 = vcmp.gt.f32.partialorder %v1240, 0.0
      %vm1277 = vcmp.gt.f32.partialorder %v1243, 0.0
      %v1278 = vmul.f32 %v1120, 0.01
      %v1279 = vmul.f32 %v1123, 0.01
      %v1280 = vmul.f32 %v1128, 0.01
      %v1281 = vmul.f32 %v1131, 0.01
      %v1282 = vmul.f32 %v1136, 0.01
      %v1283 = vmul.f32 %v1139, 0.01
      %v1284 = vmul.f32 %v1144, 0.01
      %v1285 = vmul.f32 %v1147, 0.01
      %v1286 = vmul.f32 %v1152, 0.01
      %v1287 = vmul.f32 %v1155, 0.01
      %v1288 = vmul.f32 %v1160, 0.01
      %v1289 = vmul.f32 %v1163, 0.01
      %v1290 = vmul.f32 %v1168, 0.01
      %v1291 = vmul.f32 %v1171, 0.01
      %v1292 = vmul.f32 %v1176, 0.01
      %v1293 = vmul.f32 %v1179, 0.01
      %v1294 = vmul.f32 %v1184, 0.01
      %v1295 = vmul.f32 %v1187, 0.01
      %v1296 = vmul.f32 %v1192, 0.01
      %v1297 = vmul.f32 %v1195, 0.01
      %v1298 = vmul.f32 %v1200, 0.01
      %v1299 = vmul.f32 %v1203, 0.01
      %v1300 = vmul.f32 %v1208, 0.01
      %v1301 = vmul.f32 %v1211, 0.01
      %v1302 = vmul.f32 %v1216, 0.01
      %v1303 = vmul.f32 %v1219, 0.01
      %v1304 = vmul.f32 %v1224, 0.01
      %v1305 = vmul.f32 %v1227, 0.01
      %v1306 = vmul.f32 %v1232, 0.01
      %v1307 = vmul.f32 %v1235, 0.01
      %v1308 = vmul.f32 %v1240, 0.01
      %v1309 = vmul.f32 %v1243, 0.01
      %v1310 = vsel %vm1246, %v1120, %v1278
      %v1311 = vsel %vm1247, %v1123, %v1279
      %v1312 = vsel %vm1248, %v1128, %v1280
      %v1313 = vsel %vm1249, %v1131, %v1281
      %v1314 = vsel %vm1250, %v1136, %v1282
      %v1315 = vsel %vm1251, %v1139, %v1283
      %v1316 = vsel %vm1252, %v1144, %v1284
      %v1317 = vsel %vm1253, %v1147, %v1285
      %v1318 = vsel %vm1254, %v1152, %v1286
      %v1319 = vsel %vm1255, %v1155, %v1287
      %v1320 = vsel %vm1256, %v1160, %v1288
      %v1321 = vsel %vm1257, %v1163, %v1289
      %v1322 = vsel %vm1258, %v1168, %v1290
      %v1323 = vsel %vm1259, %v1171, %v1291
      %v1324 = vsel %vm1260, %v1176, %v1292
      %v1325 = vsel %vm1261, %v1179, %v1293
      %v1326 = vsel %vm1262, %v1184, %v1294
      %v1327 = vsel %vm1263, %v1187, %v1295
      %v1328 = vsel %vm1264, %v1192, %v1296
      %v1329 = vsel %vm1265, %v1195, %v1297
      %v1330 = vsel %vm1266, %v1200, %v1298
      %v1331 = vsel %vm1267, %v1203, %v1299
      %v1332 = vsel %vm1268, %v1208, %v1300
      %v1333 = vsel %vm1269, %v1211, %v1301
      %v1334 = vsel %vm1270, %v1216, %v1302
      %v1335 = vsel %vm1271, %v1219, %v1303
      %v1336 = vsel %vm1272, %v1224, %v1304
      %v1337 = vsel %vm1273, %v1227, %v1305
      %v1338 = vsel %vm1274, %v1232, %v1306
      %v1339 = vsel %vm1275, %v1235, %v1307
      %v1340 = vsel %vm1276, %v1240, %v1308
      %v1341 = vsel %vm1277, %v1243, %v1309
      %v1342 = vpack.c.bf16 %v1311, %v1310
      %v1343 = vpack.c.bf16 %v1313, %v1312
      %v1344 = vpack.c.bf16 %v1315, %v1314
      %v1345 = vpack.c.bf16 %v1317, %v1316
      %v1346 = vpack.c.bf16 %v1319, %v1318
      %v1347 = vpack.c.bf16 %v1321, %v1320
      %v1348 = vpack.c.bf16 %v1323, %v1322
      %v1349 = vpack.c.bf16 %v1325, %v1324
      %v1350 = vpack.c.bf16 %v1327, %v1326
      %v1351 = vpack.c.bf16 %v1329, %v1328
      %v1352 = vpack.c.bf16 %v1331, %v1330
      %v1353 = vpack.c.bf16 %v1333, %v1332
      %v1354 = vpack.c.bf16 %v1335, %v1334
      %v1355 = vpack.c.bf16 %v1337, %v1336
      %v1356 = vpack.c.bf16 %v1339, %v1338
      %v1357 = vpack.c.bf16 %v1341, %v1340
      %v1359 = vshrl.u32 %v1342, 16
      %v1361 = vrot.slane %v1359, 7
      %v1362 = vshll.u32 %v1342, 16
      %v1364 = vor.u32 %v1361, %v1362
      %v1366 = vshrl.u32 %v1343, 16
      %v1368 = vrot.slane %v1366, 7
      %v1369 = vshll.u32 %v1343, 16
      %v1371 = vor.u32 %v1368, %v1369
      %v1373 = vshrl.u32 %v1344, 16
      %v1375 = vrot.slane %v1373, 7
      %v1376 = vshll.u32 %v1344, 16
      %v1378 = vor.u32 %v1375, %v1376
      %v1380 = vshrl.u32 %v1345, 16
      %v1382 = vrot.slane %v1380, 7
      %v1383 = vshll.u32 %v1345, 16
      %v1385 = vor.u32 %v1382, %v1383
      %v1387 = vshrl.u32 %v1346, 16
      %v1389 = vrot.slane %v1387, 7
      %v1390 = vshll.u32 %v1346, 16
      %v1392 = vor.u32 %v1389, %v1390
      %v1394 = vshrl.u32 %v1347, 16
      %v1396 = vrot.slane %v1394, 7
      %v1397 = vshll.u32 %v1347, 16
      %v1399 = vor.u32 %v1396, %v1397
      %v1401 = vshrl.u32 %v1348, 16
      %v1403 = vrot.slane %v1401, 7
      %v1404 = vshll.u32 %v1348, 16
      %v1406 = vor.u32 %v1403, %v1404
      %v1408 = vshrl.u32 %v1349, 16
      %v1410 = vrot.slane %v1408, 7
      %v1411 = vshll.u32 %v1349, 16
      %v1413 = vor.u32 %v1410, %v1411
      %v1415 = vshrl.u32 %v1350, 16
      %v1417 = vrot.slane %v1415, 7
      %v1418 = vshll.u32 %v1350, 16
      %v1420 = vor.u32 %v1417, %v1418
      %v1422 = vshrl.u32 %v1351, 16
      %v1424 = vrot.slane %v1422, 7
      %v1425 = vshll.u32 %v1351, 16
      %v1427 = vor.u32 %v1424, %v1425
      %v1429 = vshrl.u32 %v1352, 16
      %v1431 = vrot.slane %v1429, 7
      %v1432 = vshll.u32 %v1352, 16
      %v1434 = vor.u32 %v1431, %v1432
      %v1436 = vshrl.u32 %v1353, 16
      %v1438 = vrot.slane %v1436, 7
      %v1439 = vshll.u32 %v1353, 16
      %v1441 = vor.u32 %v1438, %v1439
      %v1443 = vshrl.u32 %v1354, 16
      %v1445 = vrot.slane %v1443, 7
      %v1446 = vshll.u32 %v1354, 16
      %v1448 = vor.u32 %v1445, %v1446
      %v1450 = vshrl.u32 %v1355, 16
      %v1452 = vrot.slane %v1450, 7
      %v1453 = vshll.u32 %v1355, 16
      %v1455 = vor.u32 %v1452, %v1453
      %v1457 = vshrl.u32 %v1356, 16
      %v1459 = vrot.slane %v1457, 7
      %v1460 = vshll.u32 %v1356, 16
      %v1462 = vor.u32 %v1459, %v1460
      %v1464 = vshrl.u32 %v1357, 16
      %v1466 = vrot.slane %v1464, 7
      %v1467 = vshll.u32 %v1357, 16
      %v1469 = vor.u32 %v1466, %v1467
      %v1486 = vld [vmem:[#allocation2] sm:$0xff]
      %v1487 = vsel %vm514, %v1364, %v1486
      %1488 = vst [vmem:[#allocation2] sm:$0xff] %v1487
      %v1489 = vld [vmem:[#allocation2 + $0x18] sm:$0xff]
      %v1490 = vsel %vm514, %v1371, %v1489
      %1491 = vst [vmem:[#allocation2 + $0x18] sm:$0xff] %v1490
      %v1492 = vld [vmem:[#allocation2 + $0x30] sm:$0xff]
      %v1493 = vsel %vm514, %v1378, %v1492
      %1494 = vst [vmem:[#allocation2 + $0x30] sm:$0xff] %v1493
      %v1495 = vld [vmem:[#allocation2 + $0x48] sm:$0xff]
      %v1496 = vsel %vm514, %v1385, %v1495
      %1497 = vst [vmem:[#allocation2 + $0x48] sm:$0xff] %v1496
      %v1498 = vld [vmem:[#allocation2 + $0x60] sm:$0xff]
      %v1499 = vsel %vm514, %v1392, %v1498
      %1500 = vst [vmem:[#allocation2 + $0x60] sm:$0xff] %v1499
      %v1501 = vld [vmem:[#allocation2 + $0x78] sm:$0xff]
      %v1502 = vsel %vm514, %v1399, %v1501
      %1503 = vst [vmem:[#allocation2 + $0x78] sm:$0xff] %v1502
      %v1504 = vld [vmem:[#allocation2 + $0x90] sm:$0xff]
      %v1505 = vsel %vm514, %v1406, %v1504
      %1506 = vst [vmem:[#allocation2 + $0x90] sm:$0xff] %v1505
      %v1507 = vld [vmem:[#allocation2 + $0xa8] sm:$0xff]
      %v1508 = vsel %vm514, %v1413, %v1507
      %1509 = vst [vmem:[#allocation2 + $0xa8] sm:$0xff] %v1508
      %v1510 = vld [vmem:[#allocation2 + $0xc0] sm:$0xff]
      %v1511 = vsel %vm514, %v1420, %v1510
      %1512 = vst [vmem:[#allocation2 + $0xc0] sm:$0xff] %v1511
      %v1513 = vld [vmem:[#allocation2 + $0xd8] sm:$0xff]
      %v1514 = vsel %vm514, %v1427, %v1513
      %1515 = vst [vmem:[#allocation2 + $0xd8] sm:$0xff] %v1514
      %v1516 = vld [vmem:[#allocation2 + $0xf0] sm:$0xff]
      %v1517 = vsel %vm514, %v1434, %v1516
      %1518 = vst [vmem:[#allocation2 + $0xf0] sm:$0xff] %v1517
      %v1519 = vld [vmem:[#allocation2 + $0x108] sm:$0xff]
      %v1520 = vsel %vm514, %v1441, %v1519
      %1521 = vst [vmem:[#allocation2 + $0x108] sm:$0xff] %v1520
      %v1522 = vld [vmem:[#allocation2 + $0x120] sm:$0xff]
      %v1523 = vsel %vm514, %v1448, %v1522
      %1524 = vst [vmem:[#allocation2 + $0x120] sm:$0xff] %v1523
      %v1525 = vld [vmem:[#allocation2 + $0x138] sm:$0xff]
      %v1526 = vsel %vm514, %v1455, %v1525
      %1527 = vst [vmem:[#allocation2 + $0x138] sm:$0xff] %v1526
      %v1528 = vld [vmem:[#allocation2 + $0x150] sm:$0xff]
      %v1529 = vsel %vm514, %v1462, %v1528
      %1530 = vst [vmem:[#allocation2 + $0x150] sm:$0xff] %v1529
      %v1531 = vld [vmem:[#allocation2 + $0x168] sm:$0xff]
      %v1532 = vsel %vm514, %v1469, %v1531
      %1533 = vst [vmem:[#allocation2 + $0x168] sm:$0xff] %v1532
      %1534 = vst [vmem:[#allocation2 + $0x8] sm:$0xff] %v1342
      %1535 = vst [vmem:[#allocation2 + $0x20] sm:$0xff] %v1343
      %1536 = vst [vmem:[#allocation2 + $0x38] sm:$0xff] %v1344
      %1537 = vst [vmem:[#allocation2 + $0x50] sm:$0xff] %v1345
      %1538 = vst [vmem:[#allocation2 + $0x68] sm:$0xff] %v1346
      %1539 = vst [vmem:[#allocation2 + $0x80] sm:$0xff] %v1347
      %1540 = vst [vmem:[#allocation2 + $0x98] sm:$0xff] %v1348
      %1541 = vst [vmem:[#allocation2 + $0xb0] sm:$0xff] %v1349
      %1542 = vst [vmem:[#allocation2 + $0xc8] sm:$0xff] %v1350
      %1543 = vst [vmem:[#allocation2 + $0xe0] sm:$0xff] %v1351
      %1544 = vst [vmem:[#allocation2 + $0xf8] sm:$0xff] %v1352
      %1545 = vst [vmem:[#allocation2 + $0x110] sm:$0xff] %v1353
      %1546 = vst [vmem:[#allocation2 + $0x128] sm:$0xff] %v1354
      %1547 = vst [vmem:[#allocation2 + $0x140] sm:$0xff] %v1355
      %1548 = vst [vmem:[#allocation2 + $0x158] sm:$0xff] %v1356
      %1549 = vst [vmem:[#allocation2 + $0x170] sm:$0xff] %v1357
      %v1550 = vrot.slane %v1362, 1
      %v1551 = vor.u32 %v1359, %v1550
      %v1552 = vrot.slane %v1369, 1
      %v1553 = vor.u32 %v1366, %v1552
      %v1554 = vrot.slane %v1376, 1
      %v1555 = vor.u32 %v1373, %v1554
      %v1556 = vrot.slane %v1383, 1
      %v1557 = vor.u32 %v1380, %v1556
      %v1558 = vrot.slane %v1390, 1
      %v1559 = vor.u32 %v1387, %v1558
      %v1560 = vrot.slane %v1397, 1
      %v1561 = vor.u32 %v1394, %v1560
      %v1562 = vrot.slane %v1404, 1
      %v1563 = vor.u32 %v1401, %v1562
      %v1564 = vrot.slane %v1411, 1
      %v1565 = vor.u32 %v1408, %v1564
      %v1566 = vrot.slane %v1418, 1
      %v1567 = vor.u32 %v1415, %v1566
      %v1568 = vrot.slane %v1425, 1
      %v1569 = vor.u32 %v1422, %v1568
      %v1570 = vrot.slane %v1432, 1
      %v1571 = vor.u32 %v1429, %v1570
      %v1572 = vrot.slane %v1439, 1
      %v1573 = vor.u32 %v1436, %v1572
      %v1574 = vrot.slane %v1446, 1
      %v1575 = vor.u32 %v1443, %v1574
      %v1576 = vrot.slane %v1453, 1
      %v1577 = vor.u32 %v1450, %v1576
      %v1578 = vrot.slane %v1460, 1
      %v1579 = vor.u32 %v1457, %v1578
      %v1580 = vrot.slane %v1467, 1
      %v1581 = vor.u32 %v1464, %v1580
      %v1598 = vld [vmem:[#allocation2 + $0x10] sm:$0xff]
      %v1599 = vsel %vm628, %v1551, %v1598
      %1600 = vst [vmem:[#allocation2 + $0x10] sm:$0xff] %v1599
      %v1601 = vld [vmem:[#allocation2 + $0x28] sm:$0xff]
      %v1602 = vsel %vm628, %v1553, %v1601
      %1603 = vst [vmem:[#allocation2 + $0x28] sm:$0xff] %v1602
      %v1604 = vld [vmem:[#allocation2 + $0x40] sm:$0xff]
      %v1605 = vsel %vm628, %v1555, %v1604
      %1606 = vst [vmem:[#allocation2 + $0x40] sm:$0xff] %v1605
      %v1607 = vld [vmem:[#allocation2 + $0x58] sm:$0xff]
      %v1608 = vsel %vm628, %v1557, %v1607
      %1609 = vst [vmem:[#allocation2 + $0x58] sm:$0xff] %v1608
      %v1610 = vld [vmem:[#allocation2 + $0x70] sm:$0xff]
      %v1611 = vsel %vm628, %v1559, %v1610
      %1612 = vst [vmem:[#allocation2 + $0x70] sm:$0xff] %v1611
      %v1613 = vld [vmem:[#allocation2 + $0x88] sm:$0xff]
      %v1614 = vsel %vm628, %v1561, %v1613
      %1615 = vst [vmem:[#allocation2 + $0x88] sm:$0xff] %v1614
      %v1616 = vld [vmem:[#allocation2 + $0xa0] sm:$0xff]
      %v1617 = vsel %vm628, %v1563, %v1616
      %1618 = vst [vmem:[#allocation2 + $0xa0] sm:$0xff] %v1617
      %v1619 = vld [vmem:[#allocation2 + $0xb8] sm:$0xff]
      %v1620 = vsel %vm628, %v1565, %v1619
      %1621 = vst [vmem:[#allocation2 + $0xb8] sm:$0xff] %v1620
      %v1622 = vld [vmem:[#allocation2 + $0xd0] sm:$0xff]
      %v1623 = vsel %vm628, %v1567, %v1622
      %1624 = vst [vmem:[#allocation2 + $0xd0] sm:$0xff] %v1623
      %v1625 = vld [vmem:[#allocation2 + $0xe8] sm:$0xff]
      %v1626 = vsel %vm628, %v1569, %v1625
      %1627 = vst [vmem:[#allocation2 + $0xe8] sm:$0xff] %v1626
      %v1628 = vld [vmem:[#allocation2 + $0x100] sm:$0xff]
      %v1629 = vsel %vm628, %v1571, %v1628
      %1630 = vst [vmem:[#allocation2 + $0x100] sm:$0xff] %v1629
      %v1631 = vld [vmem:[#allocation2 + $0x118] sm:$0xff]
      %v1632 = vsel %vm628, %v1573, %v1631
      %1633 = vst [vmem:[#allocation2 + $0x118] sm:$0xff] %v1632
      %v1634 = vld [vmem:[#allocation2 + $0x130] sm:$0xff]
      %v1635 = vsel %vm628, %v1575, %v1634
      %1636 = vst [vmem:[#allocation2 + $0x130] sm:$0xff] %v1635
      %v1637 = vld [vmem:[#allocation2 + $0x148] sm:$0xff]
      %v1638 = vsel %vm628, %v1577, %v1637
      %1639 = vst [vmem:[#allocation2 + $0x148] sm:$0xff] %v1638
      %v1640 = vld [vmem:[#allocation2 + $0x160] sm:$0xff]
      %v1641 = vsel %vm628, %v1579, %v1640
      %1642 = vst [vmem:[#allocation2 + $0x160] sm:$0xff] %v1641
      %v1643 = vld [vmem:[#allocation2 + $0x178] sm:$0xff]
      %v1644 = vsel %vm628, %v1581, %v1643
      %1645 = vst [vmem:[#allocation2 + $0x178] sm:$0xff] %v1644
      %v1646 = vld [vmem:[#allocation2] sm:$0xff]
      %v1647 = vld [vmem:[#allocation2 + $0x8] sm:$0xff]
      %v1648 = vld [vmem:[#allocation2 + $0x10] sm:$0xff]
      %v1649 = vld [vmem:[#allocation2 + $0x18] sm:$0xff]
      %v1650 = vld [vmem:[#allocation2 + $0x20] sm:$0xff]
      %v1651 = vld [vmem:[#allocation2 + $0x28] sm:$0xff]
      %v1652 = vld [vmem:[#allocation2 + $0x30] sm:$0xff]
      %v1653 = vld [vmem:[#allocation2 + $0x38] sm:$0xff]
      %v1654 = vld [vmem:[#allocation2 + $0x40] sm:$0xff]
      %v1655 = vld [vmem:[#allocation2 + $0x48] sm:$0xff]
      %v1656 = vld [vmem:[#allocation2 + $0x50] sm:$0xff]
      %v1657 = vld [vmem:[#allocation2 + $0x58] sm:$0xff]
      %v1658 = vld [vmem:[#allocation2 + $0x60] sm:$0xff]
      %v1659 = vld [vmem:[#allocation2 + $0x68] sm:$0xff]
      %v1660 = vld [vmem:[#allocation2 + $0x70] sm:$0xff]
      %v1661 = vld [vmem:[#allocation2 + $0x78] sm:$0xff]
      %v1662 = vld [vmem:[#allocation2 + $0x80] sm:$0xff]
      %v1663 = vld [vmem:[#allocation2 + $0x88] sm:$0xff]
      %v1664 = vld [vmem:[#allocation2 + $0x90] sm:$0xff]
      %v1665 = vld [vmem:[#allocation2 + $0x98] sm:$0xff]
      %v1666 = vld [vmem:[#allocation2 + $0xa0] sm:$0xff]
      %v1667 = vld [vmem:[#allocation2 + $0xa8] sm:$0xff]
      %v1668 = vld [vmem:[#allocation2 + $0xb0] sm:$0xff]
      %v1669 = vld [vmem:[#allocation2 + $0xb8] sm:$0xff]
      %v1670 = vld [vmem:[#allocation2 + $0xc0] sm:$0xff]
      %v1671 = vld [vmem:[#allocation2 + $0xc8] sm:$0xff]
      %v1672 = vld [vmem:[#allocation2 + $0xd0] sm:$0xff]
      %v1673 = vld [vmem:[#allocation2 + $0xd8] sm:$0xff]
      %v1674 = vld [vmem:[#allocation2 + $0xe0] sm:$0xff]
      %v1675 = vld [vmem:[#allocation2 + $0xe8] sm:$0xff]
      %v1676 = vld [vmem:[#allocation2 + $0xf0] sm:$0xff]
      %v1677 = vld [vmem:[#allocation2 + $0xf8] sm:$0xff]
      %v1678 = vld [vmem:[#allocation2 + $0x100] sm:$0xff]
      %v1679 = vld [vmem:[#allocation2 + $0x108] sm:$0xff]
      %v1680 = vld [vmem:[#allocation2 + $0x110] sm:$0xff]
      %v1681 = vld [vmem:[#allocation2 + $0x118] sm:$0xff]
      %v1682 = vld [vmem:[#allocation2 + $0x120] sm:$0xff]
      %v1683 = vld [vmem:[#allocation2 + $0x128] sm:$0xff]
      %v1684 = vld [vmem:[#allocation2 + $0x130] sm:$0xff]
      %v1685 = vld [vmem:[#allocation2 + $0x138] sm:$0xff]
      %v1686 = vld [vmem:[#allocation2 + $0x140] sm:$0xff]
      %v1687 = vld [vmem:[#allocation2 + $0x148] sm:$0xff]
      %v1688 = vld [vmem:[#allocation2 + $0x150] sm:$0xff]
      %v1689 = vld [vmem:[#allocation2 + $0x158] sm:$0xff]
      %v1690 = vld [vmem:[#allocation2 + $0x160] sm:$0xff]
      %v1691 = vld [vmem:[#allocation2 + $0x168] sm:$0xff]
      %v1692 = vld [vmem:[#allocation2 + $0x170] sm:$0xff]
      %v1693 = vld [vmem:[#allocation2 + $0x178] sm:$0xff]
      %v1694 = vld [vmem:[%s3] sm:$0xf]
      %v1695 = vld [vmem:[%s3 + $0x4] sm:$0xf]
      %v1696 = vld [vmem:[%s3 + $0x8] sm:$0xf]
      %v1697 = vld [vmem:[%s3 + $0xc] sm:$0xf]
      %v1698 = vld [vmem:[%s3 + $0x10] sm:$0xf]
      %v1699 = vld [vmem:[%s3 + $0x14] sm:$0xf]
      %v1700 = vld [vmem:[%s3 + $0x18] sm:$0xf]
      %v1701 = vld [vmem:[%s3 + $0x1c] sm:$0xf]
      %v1702 = vld [vmem:[%s3 + $0x20] sm:$0xf]
      %v1703 = vld [vmem:[%s3 + $0x24] sm:$0xf]
      %v1704 = vld [vmem:[%s3 + $0x28] sm:$0xf]
      %v1705 = vld [vmem:[%s3 + $0x2c] sm:$0xf]
      %v1706 = vld [vmem:[%s3 + $0x30] sm:$0xf]
      %v1707 = vld [vmem:[%s3 + $0x34] sm:$0xf]
      %v1708 = vld [vmem:[%s3 + $0x38] sm:$0xf]
      %v1709 = vld [vmem:[%s3 + $0x3c] sm:$0xf]
      %v1710 = vld [vmem:[%s3 + $0x40] sm:$0xf]
      %v1711 = vld [vmem:[%s3 + $0x44] sm:$0xf]
      %v1712 = vld [vmem:[%s3 + $0x48] sm:$0xf]
      %v1713 = vld [vmem:[%s3 + $0x4c] sm:$0xf]
      %v1714 = vld [vmem:[%s3 + $0x50] sm:$0xf]
      %v1715 = vld [vmem:[%s3 + $0x54] sm:$0xf]
      %v1716 = vld [vmem:[%s3 + $0x58] sm:$0xf]
      %v1717 = vld [vmem:[%s3 + $0x5c] sm:$0xf]
      %v1718 = vld [vmem:[%s3 + $0x60] sm:$0xf]
      %v1719 = vld [vmem:[%s3 + $0x64] sm:$0xf]
      %v1720 = vld [vmem:[%s3 + $0x68] sm:$0xf]
      %v1721 = vld [vmem:[%s3 + $0x6c] sm:$0xf]
      %v1722 = vld [vmem:[%s3 + $0x70] sm:$0xf]
      %v1723 = vld [vmem:[%s3 + $0x74] sm:$0xf]
      %v1724 = vld [vmem:[%s3 + $0x78] sm:$0xf]
      %v1725 = vld [vmem:[%s3 + $0x7c] sm:$0xf]
      %v1726 = vld [vmem:[%s3 + $0x80] sm:$0xf]
      %v1727 = vld [vmem:[%s3 + $0x84] sm:$0xf]
      %v1728 = vld [vmem:[%s3 + $0x88] sm:$0xf]
      %v1729 = vld [vmem:[%s3 + $0x8c] sm:$0xf]
      %v1730 = vld [vmem:[%s3 + $0x90] sm:$0xf]
      %v1731 = vld [vmem:[%s3 + $0x94] sm:$0xf]
      %v1732 = vld [vmem:[%s3 + $0x98] sm:$0xf]
      %v1733 = vld [vmem:[%s3 + $0x9c] sm:$0xf]
      %v1734 = vld [vmem:[%s3 + $0xa0] sm:$0xf]
      %v1735 = vld [vmem:[%s3 + $0xa4] sm:$0xf]
      %v1736 = vld [vmem:[%s3 + $0xa8] sm:$0xf]
      %v1737 = vld [vmem:[%s3 + $0xac] sm:$0xf]
      %v1738 = vld [vmem:[%s3 + $0xb0] sm:$0xf]
      %v1739 = vld [vmem:[%s3 + $0xb4] sm:$0xf]
      %v1740 = vld [vmem:[%s3 + $0xb8] sm:$0xf]
      %v1741 = vld [vmem:[%s3 + $0xbc] sm:$0xf]
      %v1742 = vld [vmem:[%s4] sm:$0x1]
      %v1744 = vlaneseq
      %v1745 = vshrl.u32 %v1744, 7
      %v1746 = vsub.s32 0, %v1745
      %v1747 = vrot.slane %v1742, %v1746
      %v1797 = vunpack.c.l.b16 %v1694
      %v1798 = vunpack.c.l.b16 %v1695
      %v1799 = vunpack.c.l.b16 %v1696
      %v1800 = vunpack.c.l.b16 %v1697
      %v1801 = vunpack.c.l.b16 %v1698
      %v1802 = vunpack.c.l.b16 %v1699
      %v1803 = vunpack.c.l.b16 %v1700
      %v1804 = vunpack.c.l.b16 %v1701
      %v1805 = vunpack.c.l.b16 %v1702
      %v1806 = vunpack.c.l.b16 %v1703
      %v1807 = vunpack.c.l.b16 %v1704
      %v1808 = vunpack.c.l.b16 %v1705
      %v1809 = vunpack.c.l.b16 %v1706
      %v1810 = vunpack.c.l.b16 %v1707
      %v1811 = vunpack.c.l.b16 %v1708
      %v1812 = vunpack.c.l.b16 %v1709
      %v1813 = vunpack.c.l.b16 %v1710
      %v1814 = vunpack.c.l.b16 %v1711
      %v1815 = vunpack.c.l.b16 %v1712
      %v1816 = vunpack.c.l.b16 %v1713
      %v1817 = vunpack.c.l.b16 %v1714
      %v1818 = vunpack.c.l.b16 %v1715
      %v1819 = vunpack.c.l.b16 %v1716
      %v1820 = vunpack.c.l.b16 %v1717
      %v1821 = vunpack.c.l.b16 %v1718
      %v1822 = vunpack.c.l.b16 %v1719
      %v1823 = vunpack.c.l.b16 %v1720
      %v1824 = vunpack.c.l.b16 %v1721
      %v1825 = vunpack.c.l.b16 %v1722
      %v1826 = vunpack.c.l.b16 %v1723
      %v1827 = vunpack.c.l.b16 %v1724
      %v1828 = vunpack.c.l.b16 %v1725
      %v1829 = vunpack.c.l.b16 %v1726
      %v1830 = vunpack.c.l.b16 %v1727
      %v1831 = vunpack.c.l.b16 %v1728
      %v1832 = vunpack.c.l.b16 %v1729
      %v1833 = vunpack.c.l.b16 %v1730
      %v1834 = vunpack.c.l.b16 %v1731
      %v1835 = vunpack.c.l.b16 %v1732
      %v1836 = vunpack.c.l.b16 %v1733
      %v1837 = vunpack.c.l.b16 %v1734
      %v1838 = vunpack.c.l.b16 %v1735
      %v1839 = vunpack.c.l.b16 %v1736
      %v1840 = vunpack.c.l.b16 %v1737
      %v1841 = vunpack.c.l.b16 %v1738
      %v1842 = vunpack.c.l.b16 %v1739
      %v1843 = vunpack.c.l.b16 %v1740
      %v1844 = vunpack.c.l.b16 %v1741
      %v1845 = vpack.c.b16 %v1798, %v1797
      %v1846 = vpack.c.b16 %v1800, %v1799
      %v1847 = vpack.c.b16 %v1802, %v1801
      %v1848 = vpack.c.b16 %v1804, %v1803
      %v1849 = vpack.c.b16 %v1806, %v1805
      %v1850 = vpack.c.b16 %v1808, %v1807
      %v1851 = vpack.c.b16 %v1810, %v1809
      %v1852 = vpack.c.b16 %v1812, %v1811
      %v1853 = vpack.c.b16 %v1814, %v1813
      %v1854 = vpack.c.b16 %v1816, %v1815
      %v1855 = vpack.c.b16 %v1818, %v1817
      %v1856 = vpack.c.b16 %v1820, %v1819
      %v1857 = vpack.c.b16 %v1822, %v1821
      %v1858 = vpack.c.b16 %v1824, %v1823
      %v1859 = vpack.c.b16 %v1826, %v1825
      %v1860 = vpack.c.b16 %v1828, %v1827
      %v1861 = vpack.c.b16 %v1830, %v1829
      %v1862 = vpack.c.b16 %v1832, %v1831
      %v1863 = vpack.c.b16 %v1834, %v1833
      %v1864 = vpack.c.b16 %v1836, %v1835
      %v1865 = vpack.c.b16 %v1838, %v1837
      %v1866 = vpack.c.b16 %v1840, %v1839
      %v1867 = vpack.c.b16 %v1842, %v1841
      %v1868 = vpack.c.b16 %v1844, %v1843
      %1893 = vmatprep.subr.bf16.mxu0 0
      %1894 = vmatpush1.bf16.msra.mxu0 %v1845
      %1895 = vmatprep.subr.bf16.mxu0 0
      %1896 = vmatpush1.bf16.msra.mxu0 %v1846
      %1897 = vmatprep.subr.bf16.mxu0 0
      %1898 = vmatpush1.bf16.msra.mxu0 %v1847
      %1899 = vmatprep.subr.bf16.mxu0 0
      %1900 = vmatpush1.bf16.msra.mxu0 %v1848
      %1901 = vmatprep.subr.bf16.mxu0 0
      %1902 = vmatpush1.bf16.msra.mxu0 %v1849
      %1903 = vmatprep.subr.bf16.mxu0 0
      %1904 = vmatpush1.bf16.msra.mxu0 %v1850
      %1905 = vmatprep.subr.bf16.mxu0 0
      %1906 = vmatpush1.bf16.msra.mxu0 %v1851
      %1907 = vmatprep.subr.bf16.mxu0 0
      %1908 = vmatpush1.bf16.msra.mxu0 %v1852
      %1909 = vmatprep.subr.bf16.mxu0 0
      %1910 = vmatpush1.bf16.msra.mxu0 %v1853
      %1911 = vmatprep.subr.bf16.mxu0 0
      %1912 = vmatpush1.bf16.msra.mxu0 %v1854
      %1913 = vmatprep.subr.bf16.mxu0 0
      %1914 = vmatpush1.bf16.msra.mxu0 %v1855
      %1915 = vmatprep.subr.bf16.mxu0 0
      %1916 = vmatpush1.bf16.msra.mxu0 %v1856
      %1917 = vmatprep.subr.bf16.mxu0 0
      %1918 = vmatpush1.bf16.msra.mxu0 %v1857
      %1919 = vmatprep.subr.bf16.mxu0 0
      %1920 = vmatpush1.bf16.msra.mxu0 %v1858
      %1921 = vmatprep.subr.bf16.mxu0 0
      %1922 = vmatpush1.bf16.msra.mxu0 %v1859
      %1923 = vmatprep.subr.bf16.mxu0 0
      %1924 = vmatpush1.bf16.msra.mxu0 %v1860
      %1925 = vmatprep.mubr.bf16.mxu0 %v1647
      %1926 = vmatmul.mubr.bf16.gmra.mrb[0].mxu0 %v1646
      %v1927 = vpop.f32.mrb[0].mxu0
      %v1928 = vadd.f32 %v1747, %v1927
      %v1929 = vpop.f32.mrb[0].mxu0
      %v1930 = vpop.f32.mrb[0].mxu0
      %v1931 = vadd.f32 %v1747, %v1930
      %v1932 = vpop.f32.mrb[0].mxu0
      %1933 = vmatprep.mubr.bf16.mxu0 %v1650
      %1934 = vmatmul.mubr.bf16.gmra.mrb[0].mxu0 %v1649
      %v1935 = vpop.f32.mrb[0].mxu0
      %v1936 = vadd.f32 %v1747, %v1935
      %v1937 = vpop.f32.mrb[0].mxu0
      %v1938 = vpop.f32.mrb[0].mxu0
      %v1939 = vadd.f32 %v1747, %v1938
      %v1940 = vpop.f32.mrb[0].mxu0
      %1941 = vmatprep.mubr.bf16.mxu0 %v1653
      %1942 = vmatmul.mubr.bf16.gmra.mrb[0].mxu0 %v1652
      %v1943 = vpop.f32.mrb[0].mxu0
      %v1944 = vadd.f32 %v1747, %v1943
      %v1945 = vpop.f32.mrb[0].mxu0
      %v1946 = vpop.f32.mrb[0].mxu0
      %v1947 = vadd.f32 %v1747, %v1946
      %v1948 = vpop.f32.mrb[0].mxu0
      %1949 = vmatprep.mubr.bf16.mxu0 %v1656
      %1950 = vmatmul.mubr.bf16.gmra.mrb[0].mxu0 %v1655
      %v1951 = vpop.f32.mrb[0].mxu0
      %v1952 = vadd.f32 %v1747, %v1951
      %v1953 = vpop.f32.mrb[0].mxu0
      %v1954 = vpop.f32.mrb[0].mxu0
      %v1955 = vadd.f32 %v1747, %v1954
      %v1956 = vpop.f32.mrb[0].mxu0
      %1957 = vmatprep.mubr.bf16.mxu0 %v1659
      %1958 = vmatmul.mubr.bf16.gmra.mrb[0].mxu0 %v1658
      %v1959 = vpop.f32.mrb[0].mxu0
      %v1960 = vadd.f32 %v1747, %v1959
      %v1961 = vpop.f32.mrb[0].mxu0
      %v1962 = vpop.f32.mrb[0].mxu0
      %v1963 = vadd.f32 %v1747, %v1962
      %v1964 = vpop.f32.mrb[0].mxu0
      %1965 = vmatprep.mubr.bf16.mxu0 %v1662
      %1966 = vmatmul.mubr.bf16.gmra.mrb[0].mxu0 %v1661
      %v1967 = vpop.f32.mrb[0].mxu0
      %v1968 = vadd.f32 %v1747, %v1967
      %v1969 = vpop.f32.mrb[0].mxu0
      %v1970 = vpop.f32.mrb[0].mxu0
      %v1971 = vadd.f32 %v1747, %v1970
      %v1972 = vpop.f32.mrb[0].mxu0
      %1973 = vmatprep.mubr.bf16.mxu0 %v1665
      %1974 = vmatmul.mubr.bf16.gmra.mrb[0].mxu0 %v1664
      %v1975 = vpop.f32.mrb[0].mxu0
      %v1976 = vadd.f32 %v1747, %v1975
      %v1977 = vpop.f32.mrb[0].mxu0
      %v1978 = vpop.f32.mrb[0].mxu0
      %v1979 = vadd.f32 %v1747, %v1978
      %v1980 = vpop.f32.mrb[0].mxu0
      %1981 = vmatprep.mubr.bf16.mxu0 %v1668
      %1982 = vmatmul.mubr.bf16.gmra.mrb[0].mxu0 %v1667
      %v1983 = vpop.f32.mrb[0].mxu0
      %v1984 = vadd.f32 %v1747, %v1983
      %v1985 = vpop.f32.mrb[0].mxu0
      %v1986 = vpop.f32.mrb[0].mxu0
      %v1987 = vadd.f32 %v1747, %v1986
      %v1988 = vpop.f32.mrb[0].mxu0
      %1989 = vmatprep.mubr.bf16.mxu0 %v1671
      %1990 = vmatmul.mubr.bf16.gmra.mrb[0].mxu0 %v1670
      %v1991 = vpop.f32.mrb[0].mxu0
      %v1992 = vadd.f32 %v1747, %v1991
      %v1993 = vpop.f32.mrb[0].mxu0
      %v1994 = vpop.f32.mrb[0].mxu0
      %v1995 = vadd.f32 %v1747, %v1994
      %v1996 = vpop.f32.mrb[0].mxu0
      %1997 = vmatprep.mubr.bf16.mxu0 %v1674
      %1998 = vmatmul.mubr.bf16.gmra.mrb[0].mxu0 %v1673
      %v1999 = vpop.f32.mrb[0].mxu0
      %v2000 = vadd.f32 %v1747, %v1999
      %v2001 = vpop.f32.mrb[0].mxu0
      %v2002 = vpop.f32.mrb[0].mxu0
      %v2003 = vadd.f32 %v1747, %v2002
      %v2004 = vpop.f32.mrb[0].mxu0
      %2005 = vmatprep.mubr.bf16.mxu0 %v1677
      %2006 = vmatmul.mubr.bf16.gmra.mrb[0].mxu0 %v1676
      %v2007 = vpop.f32.mrb[0].mxu0
      %v2008 = vadd.f32 %v1747, %v2007
      %v2009 = vpop.f32.mrb[0].mxu0
      %v2010 = vpop.f32.mrb[0].mxu0
      %v2011 = vadd.f32 %v1747, %v2010
      %v2012 = vpop.f32.mrb[0].mxu0
      %2013 = vmatprep.mubr.bf16.mxu0 %v1680
      %2014 = vmatmul.mubr.bf16.gmra.mrb[0].mxu0 %v1679
      %v2015 = vpop.f32.mrb[0].mxu0
      %v2016 = vadd.f32 %v1747, %v2015
      %v2017 = vpop.f32.mrb[0].mxu0
      %v2018 = vpop.f32.mrb[0].mxu0
      %v2019 = vadd.f32 %v1747, %v2018
      %v2020 = vpop.f32.mrb[0].mxu0
      %2021 = vmatprep.mubr.bf16.mxu0 %v1683
      %2022 = vmatmul.mubr.bf16.gmra.mrb[0].mxu0 %v1682
      %v2023 = vpop.f32.mrb[0].mxu0
      %v2024 = vadd.f32 %v1747, %v2023
      %v2025 = vpop.f32.mrb[0].mxu0
      %v2026 = vpop.f32.mrb[0].mxu0
      %v2027 = vadd.f32 %v1747, %v2026
      %v2028 = vpop.f32.mrb[0].mxu0
      %2029 = vmatprep.mubr.bf16.mxu0 %v1686
      %2030 = vmatmul.mubr.bf16.gmra.mrb[0].mxu0 %v1685
      %v2031 = vpop.f32.mrb[0].mxu0
      %v2032 = vadd.f32 %v1747, %v2031
      %v2033 = vpop.f32.mrb[0].mxu0
      %v2034 = vpop.f32.mrb[0].mxu0
      %v2035 = vadd.f32 %v1747, %v2034
      %v2036 = vpop.f32.mrb[0].mxu0
      %2037 = vmatprep.mubr.bf16.mxu0 %v1689
      %2038 = vmatmul.mubr.bf16.gmra.mrb[0].mxu0 %v1688
      %v2039 = vpop.f32.mrb[0].mxu0
      %v2040 = vadd.f32 %v1747, %v2039
      %v2041 = vpop.f32.mrb[0].mxu0
      %v2042 = vpop.f32.mrb[0].mxu0
      %v2043 = vadd.f32 %v1747, %v2042
      %v2044 = vpop.f32.mrb[0].mxu0
      %2045 = vmatprep.mubr.bf16.mxu0 %v1692
      %2046 = vmatmul.mubr.bf16.gmra.mrb[0].mxu0 %v1691
      %v2047 = vpop.f32.mrb[0].mxu0
      %v2048 = vadd.f32 %v1747, %v2047
      %v2049 = vpop.f32.mrb[0].mxu0
      %v2050 = vpop.f32.mrb[0].mxu0
      %v2051 = vadd.f32 %v1747, %v2050
      %v2052 = vpop.f32.mrb[0].mxu0
      %2053 = vdwg.mxu0
      %2054 = vmatprep.subr.bf16.mxu0 0
      %2055 = vmatpush1.bf16.msra.mxu0 %v1861
      %2056 = vmatprep.subr.bf16.mxu0 0
      %2057 = vmatpush1.bf16.msra.mxu0 %v1862
      %2058 = vmatprep.subr.bf16.mxu0 0
      %2059 = vmatpush1.bf16.msra.mxu0 %v1863
      %2060 = vmatprep.subr.bf16.mxu0 0
      %2061 = vmatpush1.bf16.msra.mxu0 %v1864
      %2062 = vmatprep.subr.bf16.mxu0 0
      %2063 = vmatpush1.bf16.msra.mxu0 %v1865
      %2064 = vmatprep.subr.bf16.mxu0 0
      %2065 = vmatpush1.bf16.msra.mxu0 %v1866
      %2066 = vmatprep.subr.bf16.mxu0 0
      %2067 = vmatpush1.bf16.msra.mxu0 %v1867
      %2068 = vmatprep.subr.bf16.mxu0 0
      %2069 = vmatpush1.bf16.msra.mxu0 %v1868
      %2070 = vmatprep.subr.bf16.mxu0 0
      %2071 = vmatpush1.bf16.msra.mxu0 0
      %2072 = vmatprep.subr.bf16.mxu0 0
      %2073 = vmatpush1.bf16.msra.mxu0 0
      %2074 = vmatprep.subr.bf16.mxu0 0
      %2075 = vmatpush1.bf16.msra.mxu0 0
      %2076 = vmatprep.subr.bf16.mxu0 0
      %2077 = vmatpush1.bf16.msra.mxu0 0
      %2078 = vmatprep.subr.bf16.mxu0 0
      %2079 = vmatpush1.bf16.msra.mxu0 0
      %2080 = vmatprep.subr.bf16.mxu0 0
      %2081 = vmatpush1.bf16.msra.mxu0 0
      %2082 = vmatprep.subr.bf16.mxu0 0
      %2083 = vmatpush1.bf16.msra.mxu0 0
      %2084 = vmatprep.subr.bf16.mxu0 0
      %2085 = vmatpush1.bf16.msra.mxu0 0
      %2086 = vmatprep.mubr.bf16.mxu0 0
      %2087 = vmatmul.mubr.bf16.gmra.mrb[0].mxu0 %v1648
      %v2088 = vpop.f32.mrb[0].mxu0
      %v2089 = vadd.f32 %v1928, %v2088
      %v2090 = vpop.f32.mrb[0].mxu0
      %v2091 = vpop.f32.mrb[0].mxu0
      %v2092 = vadd.f32 %v1931, %v2091
      %v2093 = vpop.f32.mrb[0].mxu0
      %2094 = vmatprep.mubr.bf16.mxu0 0
      %2095 = vmatmul.mubr.bf16.gmra.mrb[0].mxu0 %v1651
      %v2096 = vpop.f32.mrb[0].mxu0
      %v2097 = vadd.f32 %v1936, %v2096
      %v2098 = vpop.f32.mrb[0].mxu0
      %v2099 = vpop.f32.mrb[0].mxu0
      %v2100 = vadd.f32 %v1939, %v2099
      %v2101 = vpop.f32.mrb[0].mxu0
      %2102 = vmatprep.mubr.bf16.mxu0 0
      %2103 = vmatmul.mubr.bf16.gmra.mrb[0].mxu0 %v1654
      %v2104 = vpop.f32.mrb[0].mxu0
      %v2105 = vadd.f32 %v1944, %v2104
      %v2106 = vpop.f32.mrb[0].mxu0
      %v2107 = vpop.f32.mrb[0].mxu0
      %v2108 = vadd.f32 %v1947, %v2107
      %v2109 = vpop.f32.mrb[0].mxu0
      %2110 = vmatprep.mubr.bf16.mxu0 0
      %2111 = vmatmul.mubr.bf16.gmra.mrb[0].mxu0 %v1657
      %v2112 = vpop.f32.mrb[0].mxu0
      %v2113 = vadd.f32 %v1952, %v2112
      %v2114 = vpop.f32.mrb[0].mxu0
      %v2115 = vpop.f32.mrb[0].mxu0
      %v2116 = vadd.f32 %v1955, %v2115
      %v2117 = vpop.f32.mrb[0].mxu0
      %2118 = vmatprep.mubr.bf16.mxu0 0
      %2119 = vmatmul.mubr.bf16.gmra.mrb[0].mxu0 %v1660
      %v2120 = vpop.f32.mrb[0].mxu0
      %v2121 = vadd.f32 %v1960, %v2120
      %v2122 = vpop.f32.mrb[0].mxu0
      %v2123 = vpop.f32.mrb[0].mxu0
      %v2124 = vadd.f32 %v1963, %v2123
      %v2125 = vpop.f32.mrb[0].mxu0
      %2126 = vmatprep.mubr.bf16.mxu0 0
      %2127 = vmatmul.mubr.bf16.gmra.mrb[0].mxu0 %v1663
      %v2128 = vpop.f32.mrb[0].mxu0
      %v2129 = vadd.f32 %v1968, %v2128
      %v2130 = vpop.f32.mrb[0].mxu0
      %v2131 = vpop.f32.mrb[0].mxu0
      %v2132 = vadd.f32 %v1971, %v2131
      %v2133 = vpop.f32.mrb[0].mxu0
      %2134 = vmatprep.mubr.bf16.mxu0 0
      %2135 = vmatmul.mubr.bf16.gmra.mrb[0].mxu0 %v1666
      %v2136 = vpop.f32.mrb[0].mxu0
      %v2137 = vadd.f32 %v1976, %v2136
      %v2138 = vpop.f32.mrb[0].mxu0
      %v2139 = vpop.f32.mrb[0].mxu0
      %v2140 = vadd.f32 %v1979, %v2139
      %v2141 = vpop.f32.mrb[0].mxu0
      %2142 = vmatprep.mubr.bf16.mxu0 0
      %2143 = vmatmul.mubr.bf16.gmra.mrb[0].mxu0 %v1669
      %v2144 = vpop.f32.mrb[0].mxu0
      %v2145 = vadd.f32 %v1984, %v2144
      %v2146 = vpop.f32.mrb[0].mxu0
      %v2147 = vpop.f32.mrb[0].mxu0
      %v2148 = vadd.f32 %v1987, %v2147
      %v2149 = vpop.f32.mrb[0].mxu0
      %2150 = vmatprep.mubr.bf16.mxu0 0
      %2151 = vmatmul.mubr.bf16.gmra.mrb[0].mxu0 %v1672
      %v2152 = vpop.f32.mrb[0].mxu0
      %v2153 = vadd.f32 %v1992, %v2152
      %v2154 = vpop.f32.mrb[0].mxu0
      %v2155 = vpop.f32.mrb[0].mxu0
      %v2156 = vadd.f32 %v1995, %v2155
      %v2157 = vpop.f32.mrb[0].mxu0
      %2158 = vmatprep.mubr.bf16.mxu0 0
      %2159 = vmatmul.mubr.bf16.gmra.mrb[0].mxu0 %v1675
      %v2160 = vpop.f32.mrb[0].mxu0
      %v2161 = vadd.f32 %v2000, %v2160
      %v2162 = vpop.f32.mrb[0].mxu0
      %v2163 = vpop.f32.mrb[0].mxu0
      %v2164 = vadd.f32 %v2003, %v2163
      %v2165 = vpop.f32.mrb[0].mxu0
      %2166 = vmatprep.mubr.bf16.mxu0 0
      %2167 = vmatmul.mubr.bf16.gmra.mrb[0].mxu0 %v1678
      %v2168 = vpop.f32.mrb[0].mxu0
      %v2169 = vadd.f32 %v2008, %v2168
      %v2170 = vpop.f32.mrb[0].mxu0
      %v2171 = vpop.f32.mrb[0].mxu0
      %v2172 = vadd.f32 %v2011, %v2171
      %v2173 = vpop.f32.mrb[0].mxu0
      %2174 = vmatprep.mubr.bf16.mxu0 0
      %2175 = vmatmul.mubr.bf16.gmra.mrb[0].mxu0 %v1681
      %v2176 = vpop.f32.mrb[0].mxu0
      %v2177 = vadd.f32 %v2016, %v2176
      %v2178 = vpop.f32.mrb[0].mxu0
      %v2179 = vpop.f32.mrb[0].mxu0
      %v2180 = vadd.f32 %v2019, %v2179
      %v2181 = vpop.f32.mrb[0].mxu0
      %2182 = vmatprep.mubr.bf16.mxu0 0
      %2183 = vmatmul.mubr.bf16.gmra.mrb[0].mxu0 %v1684
      %v2184 = vpop.f32.mrb[0].mxu0
      %v2185 = vadd.f32 %v2024, %v2184
      %v2186 = vpop.f32.mrb[0].mxu0
      %v2187 = vpop.f32.mrb[0].mxu0
      %v2188 = vadd.f32 %v2027, %v2187
      %v2189 = vpop.f32.mrb[0].mxu0
      %2190 = vmatprep.mubr.bf16.mxu0 0
      %2191 = vmatmul.mubr.bf16.gmra.mrb[0].mxu0 %v1687
      %v2192 = vpop.f32.mrb[0].mxu0
      %v2193 = vadd.f32 %v2032, %v2192
      %v2194 = vpop.f32.mrb[0].mxu0
      %v2195 = vpop.f32.mrb[0].mxu0
      %v2196 = vadd.f32 %v2035, %v2195
      %v2197 = vpop.f32.mrb[0].mxu0
      %2198 = vmatprep.mubr.bf16.mxu0 0
      %2199 = vmatmul.mubr.bf16.gmra.mrb[0].mxu0 %v1690
      %v2200 = vpop.f32.mrb[0].mxu0
      %v2201 = vadd.f32 %v2040, %v2200
      %v2202 = vpop.f32.mrb[0].mxu0
      %v2203 = vpop.f32.mrb[0].mxu0
      %v2204 = vadd.f32 %v2043, %v2203
      %v2205 = vpop.f32.mrb[0].mxu0
      %2206 = vmatprep.mubr.bf16.mxu0 0
      %2207 = vmatmul.mubr.bf16.gmra.mrb[0].mxu0 %v1693
      %v2208 = vpop.f32.mrb[0].mxu0
      %v2209 = vadd.f32 %v2048, %v2208
      %v2210 = vpop.f32.mrb[0].mxu0
      %v2211 = vpop.f32.mrb[0].mxu0
      %v2212 = vadd.f32 %v2051, %v2211
      %v2213 = vpop.f32.mrb[0].mxu0
      %2214 = vdwg.mxu0
      %v2215 = vadd.f32 %v2089, %v234
      %v2216 = vadd.f32 %v2092, %v235
      %v2217 = vadd.f32 %v2097, %v236
      %v2218 = vadd.f32 %v2100, %v237
      %v2219 = vadd.f32 %v2105, %v238
      %v2220 = vadd.f32 %v2108, %v239
      %v2221 = vadd.f32 %v2113, %v240
      %v2222 = vadd.f32 %v2116, %v241
      %v2223 = vadd.f32 %v2121, %v242
      %v2224 = vadd.f32 %v2124, %v243
      %v2225 = vadd.f32 %v2129, %v244
      %v2226 = vadd.f32 %v2132, %v245
      %v2227 = vadd.f32 %v2137, %v246
      %v2228 = vadd.f32 %v2140, %v247
      %v2229 = vadd.f32 %v2145, %v248
      %v2230 = vadd.f32 %v2148, %v249
      %v2231 = vadd.f32 %v2153, %v250
      %v2232 = vadd.f32 %v2156, %v251
      %v2233 = vadd.f32 %v2161, %v252
      %v2234 = vadd.f32 %v2164, %v253
      %v2235 = vadd.f32 %v2169, %v254
      %v2236 = vadd.f32 %v2172, %v255
      %v2237 = vadd.f32 %v2177, %v256
      %v2238 = vadd.f32 %v2180, %v257
      %v2239 = vadd.f32 %v2185, %v258
      %v2240 = vadd.f32 %v2188, %v259
      %v2241 = vadd.f32 %v2193, %v260
      %v2242 = vadd.f32 %v2196, %v261
      %v2243 = vadd.f32 %v2201, %v262
      %v2244 = vadd.f32 %v2204, %v263
      %v2245 = vadd.f32 %v2209, %v264
      %v2246 = vadd.f32 %v2212, %v265
      %vm2247 = vcmp.gt.f32.partialorder %v2215, 0.0
      %vm2248 = vcmp.gt.f32.partialorder %v2216, 0.0
      %vm2249 = vcmp.gt.f32.partialorder %v2217, 0.0
      %vm2250 = vcmp.gt.f32.partialorder %v2218, 0.0
      %vm2251 = vcmp.gt.f32.partialorder %v2219, 0.0
      %vm2252 = vcmp.gt.f32.partialorder %v2220, 0.0
      %vm2253 = vcmp.gt.f32.partialorder %v2221, 0.0
      %vm2254 = vcmp.gt.f32.partialorder %v2222, 0.0
      %vm2255 = vcmp.gt.f32.partialorder %v2223, 0.0
      %vm2256 = vcmp.gt.f32.partialorder %v2224, 0.0
      %vm2257 = vcmp.gt.f32.partialorder %v2225, 0.0
      %vm2258 = vcmp.gt.f32.partialorder %v2226, 0.0
      %vm2259 = vcmp.gt.f32.partialorder %v2227, 0.0
      %vm2260 = vcmp.gt.f32.partialorder %v2228, 0.0
      %vm2261 = vcmp.gt.f32.partialorder %v2229, 0.0
      %vm2262 = vcmp.gt.f32.partialorder %v2230, 0.0
      %vm2263 = vcmp.gt.f32.partialorder %v2231, 0.0
      %vm2264 = vcmp.gt.f32.partialorder %v2232, 0.0
      %vm2265 = vcmp.gt.f32.partialorder %v2233, 0.0
      %vm2266 = vcmp.gt.f32.partialorder %v2234, 0.0
      %vm2267 = vcmp.gt.f32.partialorder %v2235, 0.0
      %vm2268 = vcmp.gt.f32.partialorder %v2236, 0.0
      %vm2269 = vcmp.gt.f32.partialorder %v2237, 0.0
      %vm2270 = vcmp.gt.f32.partialorder %v2238, 0.0
      %vm2271 = vcmp.gt.f32.partialorder %v2239, 0.0
      %vm2272 = vcmp.gt.f32.partialorder %v2240, 0.0
      %vm2273 = vcmp.gt.f32.partialorder %v2241, 0.0
      %vm2274 = vcmp.gt.f32.partialorder %v2242, 0.0
      %vm2275 = vcmp.gt.f32.partialorder %v2243, 0.0
      %vm2276 = vcmp.gt.f32.partialorder %v2244, 0.0
      %vm2277 = vcmp.gt.f32.partialorder %v2245, 0.0
      %vm2278 = vcmp.gt.f32.partialorder %v2246, 0.0
      %v2279 = vmul.f32 %v2215, 0.01
      %v2280 = vmul.f32 %v2216, 0.01
      %v2281 = vmul.f32 %v2217, 0.01
      %v2282 = vmul.f32 %v2218, 0.01
      %v2283 = vmul.f32 %v2219, 0.01
      %v2284 = vmul.f32 %v2220, 0.01
      %v2285 = vmul.f32 %v2221, 0.01
      %v2286 = vmul.f32 %v2222, 0.01
      %v2287 = vmul.f32 %v2223, 0.01
      %v2288 = vmul.f32 %v2224, 0.01
      %v2289 = vmul.f32 %v2225, 0.01
      %v2290 = vmul.f32 %v2226, 0.01
      %v2291 = vmul.f32 %v2227, 0.01
      %v2292 = vmul.f32 %v2228, 0.01
      %v2293 = vmul.f32 %v2229, 0.01
      %v2294 = vmul.f32 %v2230, 0.01
      %v2295 = vmul.f32 %v2231, 0.01
      %v2296 = vmul.f32 %v2232, 0.01
      %v2297 = vmul.f32 %v2233, 0.01
      %v2298 = vmul.f32 %v2234, 0.01
      %v2299 = vmul.f32 %v2235, 0.01
      %v2300 = vmul.f32 %v2236, 0.01
      %v2301 = vmul.f32 %v2237, 0.01
      %v2302 = vmul.f32 %v2238, 0.01
      %v2303 = vmul.f32 %v2239, 0.01
      %v2304 = vmul.f32 %v2240, 0.01
      %v2305 = vmul.f32 %v2241, 0.01
      %v2306 = vmul.f32 %v2242, 0.01
      %v2307 = vmul.f32 %v2243, 0.01
      %v2308 = vmul.f32 %v2244, 0.01
      %v2309 = vmul.f32 %v2245, 0.01
      %v2310 = vmul.f32 %v2246, 0.01
      %v2311 = vsel %vm2247, %v2215, %v2279
      %v2312 = vsel %vm2248, %v2216, %v2280
      %v2313 = vsel %vm2249, %v2217, %v2281
      %v2314 = vsel %vm2250, %v2218, %v2282
      %v2315 = vsel %vm2251, %v2219, %v2283
      %v2316 = vsel %vm2252, %v2220, %v2284
      %v2317 = vsel %vm2253, %v2221, %v2285
      %v2318 = vsel %vm2254, %v2222, %v2286
      %v2319 = vsel %vm2255, %v2223, %v2287
      %v2320 = vsel %vm2256, %v2224, %v2288
      %v2321 = vsel %vm2257, %v2225, %v2289
      %v2322 = vsel %vm2258, %v2226, %v2290
      %v2323 = vsel %vm2259, %v2227, %v2291
      %v2324 = vsel %vm2260, %v2228, %v2292
      %v2325 = vsel %vm2261, %v2229, %v2293
      %v2326 = vsel %vm2262, %v2230, %v2294
      %v2327 = vsel %vm2263, %v2231, %v2295
      %v2328 = vsel %vm2264, %v2232, %v2296
      %v2329 = vsel %vm2265, %v2233, %v2297
      %v2330 = vsel %vm2266, %v2234, %v2298
      %v2331 = vsel %vm2267, %v2235, %v2299
      %v2332 = vsel %vm2268, %v2236, %v2300
      %v2333 = vsel %vm2269, %v2237, %v2301
      %v2334 = vsel %vm2270, %v2238, %v2302
      %v2335 = vsel %vm2271, %v2239, %v2303
      %v2336 = vsel %vm2272, %v2240, %v2304
      %v2337 = vsel %vm2273, %v2241, %v2305
      %v2338 = vsel %vm2274, %v2242, %v2306
      %v2339 = vsel %vm2275, %v2243, %v2307
      %v2340 = vsel %vm2276, %v2244, %v2308
      %v2341 = vsel %vm2277, %v2245, %v2309
      %v2342 = vsel %vm2278, %v2246, %v2310
      %2343 = vst [vmem:[%s231] sm:$0xff] %v2311
      %2344 = vst [vmem:[%s231 + $0x8] sm:$0xff] %v2312
      %2345 = vst [vmem:[%s231 + $0x10] sm:$0xff] %v2313
      %2346 = vst [vmem:[%s231 + $0x18] sm:$0xff] %v2314
      %2347 = vst [vmem:[%s231 + $0x20] sm:$0xff] %v2315
      %2348 = vst [vmem:[%s231 + $0x28] sm:$0xff] %v2316
      %2349 = vst [vmem:[%s231 + $0x30] sm:$0xff] %v2317
      %2350 = vst [vmem:[%s231 + $0x38] sm:$0xff] %v2318
      %2351 = vst [vmem:[%s231 + $0x40] sm:$0xff] %v2319
      %2352 = vst [vmem:[%s231 + $0x48] sm:$0xff] %v2320
      %2353 = vst [vmem:[%s231 + $0x50] sm:$0xff] %v2321
      %2354 = vst [vmem:[%s231 + $0x58] sm:$0xff] %v2322
      %2355 = vst [vmem:[%s231 + $0x60] sm:$0xff] %v2323
      %2356 = vst [vmem:[%s231 + $0x68] sm:$0xff] %v2324
      %2357 = vst [vmem:[%s231 + $0x70] sm:$0xff] %v2325
      %2358 = vst [vmem:[%s231 + $0x78] sm:$0xff] %v2326
      %2359 = vst [vmem:[%s231 + $0x80] sm:$0xff] %v2327
      %2360 = vst [vmem:[%s231 + $0x88] sm:$0xff] %v2328
      %2361 = vst [vmem:[%s231 + $0x90] sm:$0xff] %v2329
      %2362 = vst [vmem:[%s231 + $0x98] sm:$0xff] %v2330
      %2363 = vst [vmem:[%s231 + $0xa0] sm:$0xff] %v2331
      %2364 = vst [vmem:[%s231 + $0xa8] sm:$0xff] %v2332
      %2365 = vst [vmem:[%s231 + $0xb0] sm:$0xff] %v2333
      %2366 = vst [vmem:[%s231 + $0xb8] sm:$0xff] %v2334
      %2367 = vst [vmem:[%s231 + $0xc0] sm:$0xff] %v2335
      %2368 = vst [vmem:[%s231 + $0xc8] sm:$0xff] %v2336
      %2369 = vst [vmem:[%s231 + $0xd0] sm:$0xff] %v2337
      %2370 = vst [vmem:[%s231 + $0xd8] sm:$0xff] %v2338
      %2371 = vst [vmem:[%s231 + $0xe0] sm:$0xff] %v2339
      %2372 = vst [vmem:[%s231 + $0xe8] sm:$0xff] %v2340
      %2373 = vst [vmem:[%s231 + $0xf0] sm:$0xff] %v2341
      %2374 = vst [vmem:[%s231 + $0xf8] sm:$0xff] %v2342
      %s2375 = smul.u32 16, %s16
      %p2376 = scmp.lt.s32.totalorder %s2375, 31
      %s2377 = scalar_select %p2376, %s2375, 31
      %s2378 = smul.addr %s2377, 2
      %s2379 = smul.addr %s2378, 8
      %s2380 = scalar_lea.vmem %s5, %s2379
      // Predicated region
      $region41: #{_lambda_.1} parent=39 // pred_check
        %p2381 = pneg %p144
      $region42: #{_lambda_.1} parent=39 // pred_check_branch
        %2383 = sbr.rel (%p2381) target = $region44
      $region43: #{_lambda_.1} parent=39 // pred_region
        %s2384 = smul.u32 16, %s16
      $region44: #{_lambda_.1} parent=39 // pred_fallthru
        _
    $region40: #{_lambda_.1} parent=5 // pred_fallthru
      _
    %p2385 = scmp.le.s32.totalorder 2, %s11
    // Predicated region
    $region45: #{_lambda_.1} parent=5 // pred_check
      %p2386 = pneg %p2385
    $region46: #{_lambda_.1} parent=5 // pred_check_branch
      %2388 = sbr.rel (%p2386) target = $region48
    $region47: #{_lambda_.1} parent=5 // pred_region
      %s2389 = ssub.s32 %s11, 2
      // Predicated region
      $region49: #{_lambda_.1} parent=47 // pred_check
        %p2390 = pneg %p150
      $region50: #{_lambda_.1} parent=47 // pred_check_branch
        %2392 = sbr.rel (%p2390) target = $region52
      $region51: #{_lambda_.1} parent=47 // pred_region
        %s2393 = smul.u32 16, %s17
        %p2394 = scmp.lt.s32.totalorder %s2393, 31
        %s2395 = scalar_select %p2394, %s2393, 31
        %s2396 = smul.addr %s2395, 2
        %s2397 = smul.addr %s2396, 8
        %s2398 = scalar_lea.vmem %s5, %s2397
      $region52: #{_lambda_.1} parent=47 // pred_fallthru
        _
    $region48: #{_lambda_.1} parent=5 // pred_fallthru
      _
  $region6: #{_lambda_.1} parent=0 // loop_footer
    %s15 = sadd.s32 1, %s11
  $region7: #{_lambda_.1} parent=0 // loop_footer_branch
    %10 = sbr.rel target = $region3
  $region8: #{_lambda_.1} parent=0 // loop_exit
    _

</llo_original>
